<compile_context>
chip_gen: v7x
topology: tpu7x:2x2x1
jax: 0.10.0
libtpu: 0.0.40
codegen_flags: <defaults>
</compile_context>

<pallas_src>
import functools

import jax
import jax.numpy as jnp
from jax.experimental import pallas as pl
from jax.experimental.pallas import tpu as pltpu

IMAGES = 0
QUERIES = 1
SAMPLE_USING_P = 0

_UNROLL_STATIC_MAX = 6   # statically unroll up to this many recurrent steps


# ----------------------------------------------------------------------------
# Fused Pallas kernel: DRAW-style renderer + sigmoid + Bernoulli BCE.
# Rows (spatial positions) on the lane axis; channels on the sublane axis.
# ----------------------------------------------------------------------------
def _render_bce_kernel(condx_ref, y_ref, wgx_ref, wgh_ref, bg_ref, wo_ref,
                       bo_ref, mu_ref, nll_ref, *, num_draw_steps):
    condx = condx_ref[...]                       # (Cin, TM)   bf16
    wgx = wgx_ref[...]                           # (4NH, Cin)  bf16
    wgh = wgh_ref[...]                           # (4NH, NH)   bf16
    bg = bg_ref[...]                             # (4NH, 1)    f32
    wo = wo_ref[...]                             # (Cim, NH)   bf16
    bo = bo_ref[...]                             # (Cim, 1)    f32

    tm = condx.shape[1]
    nh = wgh.shape[1]

    # Loop-invariant input contribution to the gates (bias folded in), once.
    # bf16 operands -> single-pass MXU; f32 accumulation.
    gates_x = jnp.dot(wgx, condx, preferred_element_type=jnp.float32) + bg

    def gate_update(gates, c_prev):
        # nh is a multiple of 8 -> sublane-aligned gate slices (no lane rotate)
        i_g = gates[0 * nh:1 * nh, :]
        f_g = gates[1 * nh:2 * nh, :]
        o_g = gates[2 * nh:3 * nh, :]
        g_g = gates[3 * nh:4 * nh, :]
        c_new = (jax.nn.sigmoid(f_g) * c_prev
                 + jax.nn.sigmoid(i_g) * jnp.tanh(g_g))
        h_new = jax.nn.sigmoid(o_g) * jnp.tanh(c_new)
        return h_new, c_new

    # Step 0 peeled: h == 0, so the recurrent matmul is skipped entirely.
    h, c = gate_update(gates_x, jnp.zeros((nh, tm), jnp.float32))
    h_sum = h

    def step(carry):
        h, c, h_sum = carry
        gates = gates_x + jnp.dot(wgh, h.astype(wgh.dtype),
                                  preferred_element_type=jnp.float32)
        h, c = gate_update(gates, c)
        return h, c, h_sum + h

    if num_draw_steps - 1 <= _UNROLL_STATIC_MAX:
        carry = (h, c, h_sum)
        for _ in range(num_draw_steps - 1):
            carry = step(carry)
        h, c, h_sum = carry
    else:
        # Bound live ranges for long draw loops; modest unroll keeps LLO
        # scheduling visibility.
        h, c, h_sum = jax.lax.fori_loop(
            1, num_draw_steps, lambda _, carry: step(carry),
            (h, c, h_sum), unroll=2)

    # Output projection hoisted by linearity: sum_t(wo @ h_t) == wo @ sum_t h_t
    logits = jnp.dot(wo, h_sum.astype(wo.dtype),
                     preferred_element_type=jnp.float32) + bo     # (Cim, TM)

    mu = jax.nn.sigmoid(logits)
    mu_ref[...] = mu                             # lane-dense store

    # Bernoulli BCE directly from logits (shared softplus term) with the
    # torch.nn.functional.binary_cross_entropy -100 clamp for parity.
    y = y_ref[...]                               # (Cim, TM) f32
    softplus_term = jnp.log1p(jnp.exp(-jnp.abs(logits)))
    log_mu = jnp.maximum(jnp.minimum(logits, 0.0) - softplus_term, -100.0)
    log_1mu = jnp.maximum(jnp.minimum(-logits, 0.0) - softplus_term, -100.0)
    bce = -(y * log_mu + (1.0 - y) * log_1mu)    # (Cim, TM)
    nll_ref[...] = jnp.sum(bce, axis=0, keepdims=True)   # (1, TM) lane-dense


def _pick_tile(rows, target=1024, min_blocks=2):
    """Row tile on the 128-lane axis: a multiple of 128, chosen so the grid has
    at least `min_blocks` steps (keeps both v7x TensorCores busy)."""
    unit = 128
    if rows >= min_blocks * target:
        rows_p = pl.cdiv(rows, target) * target
        return target, rows_p
    rows_p = max(pl.cdiv(rows, unit), min_blocks) * unit
    n_units = rows_p // unit
    tm_units = max(1, n_units // min_blocks)
    while n_units % tm_units:
        tm_units -= 1
    return tm_units * unit, rows_p


def render_bce_pallas(condx_t, y_t, params, num_draw_steps, tm_target=1024):
    """condx_t: (Cin, rows) ; y_t: (Cim, rows). Returns mu (Cim, rows), nll (rows,)."""
    cin, rows = condx_t.shape
    cim = y_t.shape[0]
    tm, rows_p = _pick_tile(rows, tm_target)

    condx_t = condx_t.astype(jnp.bfloat16)       # halves condx HBM/DMA traffic
    if rows_p != rows:
        pad = ((0, 0), (0, rows_p - rows))
        condx_t = jnp.pad(condx_t, pad)
        y_t = jnp.pad(y_t, pad)

    # Weights pre-transposed once (W^T @ X form) and cast to bf16 for the MXU;
    # biases stay f32 (added to the f32 accumulator).
    wgx_t = params['wgx'].T.astype(jnp.bfloat16)             # (4NH, Cin)
    wgh_t = params['wgh'].T.astype(jnp.bfloat16)             # (4NH, NH)
    wo_t = params['wo'].T.astype(jnp.bfloat16)               # (Cim, NH)
    bg_t = params['bg'].reshape(-1, 1).astype(jnp.float32)   # (4NH, 1)
    bo_t = params['bo'].reshape(-1, 1).astype(jnp.float32)   # (Cim, 1)

    kernel = functools.partial(_render_bce_kernel,
                               num_draw_steps=num_draw_steps)
    mu_t, nll_t = pl.pallas_call(
        kernel,
        out_shape=(jax.ShapeDtypeStruct((cim, rows_p), jnp.float32),
                   jax.ShapeDtypeStruct((1, rows_p), jnp.float32)),
        grid_spec=pltpu.PrefetchScalarGridSpec(
            num_scalar_prefetch=0,
            grid=(rows_p // tm,),
            in_specs=[
                pl.BlockSpec((cin, tm), lambda i: (0, i)),
                pl.BlockSpec((cim, tm), lambda i: (0, i)),
                pl.BlockSpec(wgx_t.shape, lambda i: (0, 0)),
                pl.BlockSpec(wgh_t.shape, lambda i: (0, 0)),
                pl.BlockSpec(bg_t.shape, lambda i: (0, 0)),
                pl.BlockSpec(wo_t.shape, lambda i: (0, 0)),
                pl.BlockSpec(bo_t.shape, lambda i: (0, 0)),
            ],
            out_specs=[pl.BlockSpec((cim, tm), lambda i: (0, i)),
                       pl.BlockSpec((1, tm), lambda i: (0, i))],
        ),
        compiler_params=pltpu.CompilerParams(
            dimension_semantics=("parallel",)),
    )(condx_t, y_t, wgx_t, wgh_t, bg_t, wo_t, bo_t)
    return mu_t[:, :rows], nll_t[0, :rows]


# ----------------------------------------------------------------------------
# Emission.forward  (glue in plain JAX, hot path in the fused kernel above)
# ----------------------------------------------------------------------------
def emission_forward(params, SS, XY, *, num_draw_steps, nc_query, z_height,
                     loss_type="bernoulli", std=1.0, pdT=None):
    condition, Y, X = [], [], []
    for t in range(len(XY)):
        if pdT is not None and pdT[t] == SAMPLE_USING_P:
            continue
        for b in range(len(XY[t])):
            imgs = XY[t][b][IMAGES]                      # (n, C, H, W)
            queries = XY[t][b][QUERIES]                  # (n, nc_query)
            n = imgs.shape[0]
            Y.append(imgs)
            X.append(jnp.broadcast_to(
                queries.reshape(n, nc_query, 1, 1),
                (n, nc_query, z_height, z_height)))
            cond = jnp.concatenate(
                [SS[t]['cs_t'][0][b], SS[t]['z_t'][b]], axis=0)
            condition.append(jnp.broadcast_to(cond[None], (n,) + cond.shape))

    if len(Y) == 0:
        return {
            'nll_per_t': {t: None for t in range(len(XY))},
            'nll_per_t_per_b': {t: {b: None for b in range(len(XY[t]))}
                                for t in range(len(XY))},
            'nll': None,
            'mu_Y': {t: {b: None for b in range(len(XY[t]))}
                     for t in range(len(XY))},
        }

    Y = jnp.concatenate(Y, axis=0)                       # (N, Cim, H, W)
    X = jnp.concatenate(X, axis=0)                       # (N, nc_query, H, W)
    condition = jnp.concatenate(condition, axis=0)       # (N, Ccond, H, W)
    n_Y = Y.shape[0]

    if loss_type == 'scalar_gaussian':
        # TODO(synk): loss_recon_gaussian_w_fixed_var helper not in the given source.
        raise NotImplementedError
    if loss_type != 'bernoulli':
        raise NotImplementedError

    # --- renderer: NCHW -> channels-on-sublanes / rows-on-lanes -------------
    condx = jnp.concatenate([condition, X], axis=1)      # (N, Cin, H, W)
    N, Cin, H, W = condx.shape
    Cim = Y.shape[1]
    condx_t = jnp.transpose(condx, (1, 0, 2, 3)).reshape(Cin, N * H * W)
    y_t = jnp.transpose(Y, (1, 0, 2, 3)).reshape(Cim, N * H * W)

    mu_t, nll_rows = render_bce_pallas(condx_t, y_t, params, num_draw_steps)

    mu_Y = jnp.transpose(mu_t.reshape(Cim, N, H, W), (1, 0, 2, 3))
    recon_nll_imgwise = jnp.sum(nll_rows.reshape(n_Y, H * W), axis=1)

    ret = {
        'nll_per_t': {t: None for t in range(len(XY))},
        'nll_per_t_per_b': {t: {b: None for b in range(len(XY[t]))}
                            for t in range(len(XY))},
        'nll': jnp.mean(recon_nll_imgwise),
        'mu_Y': {t: {b: None for b in range(len(XY[t]))}
                 for t in range(len(XY))},
    }
    cursor = 0
    for t in range(len(XY)):
        if pdT is not None and pdT[t] == SAMPLE_USING_P:
            continue
        cursor_t = cursor
        for b in range(len(XY[t])):
            n_Y_t_b = XY[t][b][IMAGES].shape[0]
            ret['mu_Y'][t][b] = jax.lax.stop_gradient(
                mu_Y[cursor_t:cursor_t + n_Y_t_b])
            ret['nll_per_t_per_b'][t][b] = jnp.mean(
                recon_nll_imgwise[cursor_t:cursor_t + n_Y_t_b])
            cursor_t += n_Y_t_b
        ret['nll_per_t'][t] = jnp.mean(recon_nll_imgwise[cursor:cursor_t])
        cursor = cursor_t
    return ret


# ----------------------------------------------------------------------------
# Deterministic parameter init + small example run
# ----------------------------------------------------------------------------
def init_params(key, nc_condition, nc_query, nc_lstm, im_channels):
    cin = nc_condition + nc_query
    k1, k2, k3 = jax.random.split(key, 3)
    # Gate weights split into input (wgx) and hidden (wgh) halves so the
    # condx contribution can be hoisted out of the draw loop in the kernel.
    wgx = 0.1 * jax.random.normal(k1, (cin, 4 * nc_lstm), jnp.float32)
    wgh = 0.1 * jax.random.normal(k2, (nc_lstm, 4 * nc_lstm), jnp.float32)
    bg = jnp.zeros((1, 4 * nc_lstm), jnp.float32)
    wo = 0.1 * jax.random.normal(k3, (nc_lstm, im_channels), jnp.float32)
    bo = jnp.zeros((1, im_channels), jnp.float32)
    return {'wgx': wgx, 'wgh': wgh, 'bg': bg, 'wo': wo, 'bo': bo}


if __name__ == "__main__":
    key = jax.random.PRNGKey(0)

    T, B, n_img = 2, 2, 2                 # timesteps, batch, images per (t, b)
    im_h = z_h = 8                        # z_height == im_height (no upsample)
    im_c = 3
    nc_lstm = 16                          # cs_t channels == renderer hidden
    nz = 8                                # z_t channels
    nc_condition = nc_lstm + nz           # 24
    nc_query = 8
    num_draw_steps = 3

    keys = jax.random.split(key, 8)
    params = init_params(keys[0], nc_condition, nc_query, nc_lstm, im_c)

    # SS[t] = {'cs_t': (tensor(B, nc_lstm, z_h, z_h),), 'z_t': tensor(B, nz, z_h, z_h)}
    SS = []
    for t in range(T):
        cs = 0.5 * jax.random.normal(
            jax.random.fold_in(keys[1], t), (B, nc_lstm, z_h, z_h), jnp.float32)
        zt = 0.5 * jax.random.normal(
            jax.random.fold_in(keys[2], t), (B, nz, z_h, z_h), jnp.float32)
        SS.append({'cs_t': (cs,), 'z_t': zt})

    # XY[t][b] = (images(n, C, H, W) in [0,1], queries(n, nc_query))
    XY = []
    for t in range(T):
        row = []
        for b in range(B):
            imgs = jax.random.uniform(
                jax.random.fold_in(keys[3], t * B + b),
                (n_img, im_c, im_h, im_h), jnp.float32)
            qrs = jax.random.normal(
                jax.random.fold_in(keys[4], t * B + b),
                (n_img, nc_query), jnp.float32)
            row.append((imgs, qrs))
        XY.append(row)

    out = emission_forward(
        params, SS, XY,
        num_draw_steps=num_draw_steps, nc_query=nc_query, z_height=z_h,
        loss_type='bernoulli', pdT=None)

    nll = jax.block_until_ready(out['nll'])
    jax.block_until_ready(out['mu_Y'][0][0])
    assert bool(jnp.isfinite(nll)), "non-finite nll"
    assert out['mu_Y'][1][1].shape == (n_img, im_c, im_h, im_h)
    print("KERNEL_OK")
</pallas_src>

<mosaic_0001>
module attributes {stable_mosaic.version = 11 : i64} {
  func.func @_render_bce_kernel(%arg0: i32, %arg1: memref<32x256xbf16, #tpu.memory_space<vmem>>, %arg2: memref<3x256xf32, #tpu.memory_space<vmem>>, %arg3: memref<64x32xbf16, #tpu.memory_space<vmem>>, %arg4: memref<64x16xbf16, #tpu.memory_space<vmem>>, %arg5: memref<64x1xf32, #tpu.memory_space<vmem>>, %arg6: memref<3x16xbf16, #tpu.memory_space<vmem>>, %arg7: memref<3x1xf32, #tpu.memory_space<vmem>>, %arg8: memref<3x256xf32, #tpu.memory_space<vmem>>, %arg9: memref<1x256xf32, #tpu.memory_space<vmem>>) attributes {dimension_semantics = [#tpu.dimension_semantics<parallel>], iteration_bounds = array<i64: 2>, scalar_prefetch = 0 : i64, scratch_operands = 0 : i64, tpu.core_type = #tpu.core_type<tc>, window_params = [{transform_indices = @transform_0, window_bounds = array<i64: 32, 256>}, {transform_indices = @transform_1, window_bounds = array<i64: 3, 256>}, {pipeline_mode = #tpu.pipeline_mode<synchronous>, transform_indices = @transform_2, window_bounds = array<i64: 64, 32>}, {pipeline_mode = #tpu.pipeline_mode<synchronous>, transform_indices = @transform_3, window_bounds = array<i64: 64, 16>}, {pipeline_mode = #tpu.pipeline_mode<synchronous>, transform_indices = @transform_4, window_bounds = array<i64: 64, 1>}, {pipeline_mode = #tpu.pipeline_mode<synchronous>, transform_indices = @transform_5, window_bounds = array<i64: 3, 16>}, {pipeline_mode = #tpu.pipeline_mode<synchronous>, transform_indices = @transform_6, window_bounds = array<i64: 3, 1>}, {transform_indices = @transform_7, window_bounds = array<i64: 3, 256>}, {transform_indices = @transform_8, window_bounds = array<i64: 1, 256>}]} {
    %c0 = arith.constant 0 : index
    %c0_0 = arith.constant 0 : index
    %0 = vector.load %arg1[%c0, %c0_0] : memref<32x256xbf16, #tpu.memory_space<vmem>>, vector<32x256xbf16>
    %c0_1 = arith.constant 0 : index
    %c0_2 = arith.constant 0 : index
    %1 = vector.load %arg3[%c0_1, %c0_2] : memref<64x32xbf16, #tpu.memory_space<vmem>>, vector<64x32xbf16>
    %c0_3 = arith.constant 0 : index
    %c0_4 = arith.constant 0 : index
    %2 = vector.load %arg4[%c0_3, %c0_4] : memref<64x16xbf16, #tpu.memory_space<vmem>>, vector<64x16xbf16>
    %c0_5 = arith.constant 0 : index
    %c0_6 = arith.constant 0 : index
    %3 = vector.load %arg5[%c0_5, %c0_6] : memref<64x1xf32, #tpu.memory_space<vmem>>, vector<64x1xf32>
    %c0_7 = arith.constant 0 : index
    %c0_8 = arith.constant 0 : index
    %4 = vector.load %arg6[%c0_7, %c0_8] : memref<3x16xbf16, #tpu.memory_space<vmem>>, vector<3x16xbf16>
    %c0_9 = arith.constant 0 : index
    %c0_10 = arith.constant 0 : index
    %5 = vector.load %arg7[%c0_9, %c0_10] : memref<3x1xf32, #tpu.memory_space<vmem>>, vector<3x1xf32>
    %cst = arith.constant dense<0.000000e+00> : vector<64x256xf32>
    %6 = tpu.matmul %1, %0, %cst {dimension_numbers = #tpu.dot_dimension_numbers<[1], [0], [0], [1], [0, 0, 1, 1], [], []>} : vector<64x32xbf16>, vector<32x256xbf16>, vector<64x256xf32> -> vector<64x256xf32>
    %7 = vector.broadcast %3 : vector<64x1xf32> to vector<64x256xf32>
    %8 = arith.addf %6, %7 : vector<64x256xf32>
    %cst_11 = arith.constant 0.000000e+00 : f32
    %9 = vector.broadcast %cst_11 : f32 to vector<16x256xf32>
    %10 = vector.extract_strided_slice %8 {offsets = [0, 0], sizes = [16, 256], strides = [1, 1]} : vector<64x256xf32> to vector<16x256xf32>
    %11 = vector.extract_strided_slice %8 {offsets = [16, 0], sizes = [16, 256], strides = [1, 1]} : vector<64x256xf32> to vector<16x256xf32>
    %12 = vector.extract_strided_slice %8 {offsets = [32, 0], sizes = [16, 256], strides = [1, 1]} : vector<64x256xf32> to vector<16x256xf32>
    %13 = vector.extract_strided_slice %8 {offsets = [48, 0], sizes = [16, 256], strides = [1, 1]} : vector<64x256xf32> to vector<16x256xf32>
    %14 = arith.negf %11 : vector<16x256xf32>
    %15 = math.exp %14 : vector<16x256xf32>
    %cst_12 = arith.constant 1.000000e+00 : f32
    %16 = vector.broadcast %cst_12 : f32 to vector<16x256xf32>
    %17 = arith.addf %16, %15 : vector<16x256xf32>
    %18 = arith.divf %16, %17 : vector<16x256xf32>
    %19 = arith.mulf %18, %9 : vector<16x256xf32>
    %20 = arith.negf %10 : vector<16x256xf32>
    %21 = math.exp %20 : vector<16x256xf32>
    %cst_13 = arith.constant 1.000000e+00 : f32
    %22 = vector.broadcast %cst_13 : f32 to vector<16x256xf32>
    %23 = arith.addf %22, %21 : vector<16x256xf32>
    %24 = arith.divf %22, %23 : vector<16x256xf32>
    %25 = math.tanh %13 : vector<16x256xf32>
    %26 = arith.mulf %24, %25 : vector<16x256xf32>
    %27 = arith.addf %19, %26 : vector<16x256xf32>
    %28 = arith.negf %12 : vector<16x256xf32>
    %29 = math.exp %28 : vector<16x256xf32>
    %cst_14 = arith.constant 1.000000e+00 : f32
    %30 = vector.broadcast %cst_14 : f32 to vector<16x256xf32>
    %31 = arith.addf %30, %29 : vector<16x256xf32>
    %32 = arith.divf %30, %31 : vector<16x256xf32>
    %33 = math.tanh %27 : vector<16x256xf32>
    %34 = arith.mulf %32, %33 : vector<16x256xf32>
    %35 = arith.truncf %34 : vector<16x256xf32> to vector<16x256xbf16>
    %cst_15 = arith.constant dense<0.000000e+00> : vector<64x256xf32>
    %36 = tpu.matmul %2, %35, %cst_15 {dimension_numbers = #tpu.dot_dimension_numbers<[1], [0], [0], [1], [0, 0, 1, 1], [], []>} : vector<64x16xbf16>, vector<16x256xbf16>, vector<64x256xf32> -> vector<64x256xf32>
    %37 = arith.addf %8, %36 : vector<64x256xf32>
    %38 = vector.extract_strided_slice %37 {offsets = [0, 0], sizes = [16, 256], strides = [1, 1]} : vector<64x256xf32> to vector<16x256xf32>
    %39 = vector.extract_strided_slice %37 {offsets = [16, 0], sizes = [16, 256], strides = [1, 1]} : vector<64x256xf32> to vector<16x256xf32>
    %40 = vector.extract_strided_slice %37 {offsets = [32, 0], sizes = [16, 256], strides = [1, 1]} : vector<64x256xf32> to vector<16x256xf32>
    %41 = vector.extract_strided_slice %37 {offsets = [48, 0], sizes = [16, 256], strides = [1, 1]} : vector<64x256xf32> to vector<16x256xf32>
    %42 = arith.negf %39 : vector<16x256xf32>
    %43 = math.exp %42 : vector<16x256xf32>
    %cst_16 = arith.constant 1.000000e+00 : f32
    %44 = vector.broadcast %cst_16 : f32 to vector<16x256xf32>
    %45 = arith.addf %44, %43 : vector<16x256xf32>
    %46 = arith.divf %44, %45 : vector<16x256xf32>
    %47 = arith.mulf %46, %27 : vector<16x256xf32>
    %48 = arith.negf %38 : vector<16x256xf32>
    %49 = math.exp %48 : vector<16x256xf32>
    %cst_17 = arith.constant 1.000000e+00 : f32
    %50 = vector.broadcast %cst_17 : f32 to vector<16x256xf32>
    %51 = arith.addf %50, %49 : vector<16x256xf32>
    %52 = arith.divf %50, %51 : vector<16x256xf32>
    %53 = math.tanh %41 : vector<16x256xf32>
    %54 = arith.mulf %52, %53 : vector<16x256xf32>
    %55 = arith.addf %47, %54 : vector<16x256xf32>
    %56 = arith.negf %40 : vector<16x256xf32>
    %57 = math.exp %56 : vector<16x256xf32>
    %cst_18 = arith.constant 1.000000e+00 : f32
    %58 = vector.broadcast %cst_18 : f32 to vector<16x256xf32>
    %59 = arith.addf %58, %57 : vector<16x256xf32>
    %60 = arith.divf %58, %59 : vector<16x256xf32>
    %61 = math.tanh %55 : vector<16x256xf32>
    %62 = arith.mulf %60, %61 : vector<16x256xf32>
    %63 = arith.addf %34, %62 : vector<16x256xf32>
    %64 = arith.truncf %62 : vector<16x256xf32> to vector<16x256xbf16>
    %cst_19 = arith.constant dense<0.000000e+00> : vector<64x256xf32>
    %65 = tpu.matmul %2, %64, %cst_19 {dimension_numbers = #tpu.dot_dimension_numbers<[1], [0], [0], [1], [0, 0, 1, 1], [], []>} : vector<64x16xbf16>, vector<16x256xbf16>, vector<64x256xf32> -> vector<64x256xf32>
    %66 = arith.addf %8, %65 : vector<64x256xf32>
    %67 = vector.extract_strided_slice %66 {offsets = [0, 0], sizes = [16, 256], strides = [1, 1]} : vector<64x256xf32> to vector<16x256xf32>
    %68 = vector.extract_strided_slice %66 {offsets = [16, 0], sizes = [16, 256], strides = [1, 1]} : vector<64x256xf32> to vector<16x256xf32>
    %69 = vector.extract_strided_slice %66 {offsets = [32, 0], sizes = [16, 256], strides = [1, 1]} : vector<64x256xf32> to vector<16x256xf32>
    %70 = vector.extract_strided_slice %66 {offsets = [48, 0], sizes = [16, 256], strides = [1, 1]} : vector<64x256xf32> to vector<16x256xf32>
    %71 = arith.negf %68 : vector<16x256xf32>
    %72 = math.exp %71 : vector<16x256xf32>
    %cst_20 = arith.constant 1.000000e+00 : f32
    %73 = vector.broadcast %cst_20 : f32 to vector<16x256xf32>
    %74 = arith.addf %73, %72 : vector<16x256xf32>
    %75 = arith.divf %73, %74 : vector<16x256xf32>
    %76 = arith.mulf %75, %55 : vector<16x256xf32>
    %77 = arith.negf %67 : vector<16x256xf32>
    %78 = math.exp %77 : vector<16x256xf32>
    %cst_21 = arith.constant 1.000000e+00 : f32
    %79 = vector.broadcast %cst_21 : f32 to vector<16x256xf32>
    %80 = arith.addf %79, %78 : vector<16x256xf32>
    %81 = arith.divf %79, %80 : vector<16x256xf32>
    %82 = math.tanh %70 : vector<16x256xf32>
    %83 = arith.mulf %81, %82 : vector<16x256xf32>
    %84 = arith.addf %76, %83 : vector<16x256xf32>
    %85 = arith.negf %69 : vector<16x256xf32>
    %86 = math.exp %85 : vector<16x256xf32>
    %cst_22 = arith.constant 1.000000e+00 : f32
    %87 = vector.broadcast %cst_22 : f32 to vector<16x256xf32>
    %88 = arith.addf %87, %86 : vector<16x256xf32>
    %89 = arith.divf %87, %88 : vector<16x256xf32>
    %90 = math.tanh %84 : vector<16x256xf32>
    %91 = arith.mulf %89, %90 : vector<16x256xf32>
    %92 = arith.addf %63, %91 : vector<16x256xf32>
    %93 = arith.truncf %92 : vector<16x256xf32> to vector<16x256xbf16>
    %cst_23 = arith.constant dense<0.000000e+00> : vector<3x256xf32>
    %94 = tpu.matmul %4, %93, %cst_23 {dimension_numbers = #tpu.dot_dimension_numbers<[1], [0], [0], [1], [0, 0, 1, 1], [], []>} : vector<3x16xbf16>, vector<16x256xbf16>, vector<3x256xf32> -> vector<3x256xf32>
    %95 = vector.broadcast %5 : vector<3x1xf32> to vector<3x256xf32>
    %96 = arith.addf %94, %95 : vector<3x256xf32>
    %97 = arith.negf %96 : vector<3x256xf32>
    %98 = math.exp %97 : vector<3x256xf32>
    %cst_24 = arith.constant 1.000000e+00 : f32
    %99 = vector.broadcast %cst_24 : f32 to vector<3x256xf32>
    %100 = arith.addf %99, %98 : vector<3x256xf32>
    %101 = arith.divf %99, %100 : vector<3x256xf32>
    %c0_25 = arith.constant 0 : index
    %c0_26 = arith.constant 0 : index
    %102 = vector.load %arg8[%c0_25, %c0_26] : memref<3x256xf32, #tpu.memory_space<vmem>>, vector<3x256xf32>
    tpu.vector_store %arg8[%c0_25, %c0_26], %101 {strides = array<i32>} : memref<3x256xf32, #tpu.memory_space<vmem>>, vector<3x256xf32>,
    %c0_27 = arith.constant 0 : index
    %c0_28 = arith.constant 0 : index
    %103 = vector.load %arg2[%c0_27, %c0_28] : memref<3x256xf32, #tpu.memory_space<vmem>>, vector<3x256xf32>
    %104 = math.absf %96 : vector<3x256xf32>
    %cst_29 = arith.constant 0.000000e+00 : f32
    %105 = vector.broadcast %cst_29 : f32 to vector<3x256xf32>
    %106 = arith.subf %105, %104 : vector<3x256xf32>
    %107 = math.exp %106 : vector<3x256xf32>
    %108 = math.log1p %107 : vector<3x256xf32>
    %cst_30 = arith.constant 0.000000e+00 : f32
    %109 = vector.broadcast %cst_30 : f32 to vector<3x256xf32>
    %110 = arith.minimumf %96, %109 : vector<3x256xf32>
    %111 = arith.subf %110, %108 : vector<3x256xf32>
    %cst_31 = arith.constant -1.000000e+02 : f32
    %112 = vector.broadcast %cst_31 : f32 to vector<3x256xf32>
    %113 = arith.maximumf %111, %112 : vector<3x256xf32>
    %cst_32 = arith.constant 0.000000e+00 : f32
    %114 = vector.broadcast %cst_32 : f32 to vector<3x256xf32>
    %115 = arith.subf %114, %96 : vector<3x256xf32>
    %cst_33 = arith.constant 0.000000e+00 : f32
    %116 = vector.broadcast %cst_33 : f32 to vector<3x256xf32>
    %117 = arith.minimumf %115, %116 : vector<3x256xf32>
    %118 = arith.subf %117, %108 : vector<3x256xf32>
    %cst_34 = arith.constant -1.000000e+02 : f32
    %119 = vector.broadcast %cst_34 : f32 to vector<3x256xf32>
    %120 = arith.maximumf %118, %119 : vector<3x256xf32>
    %121 = arith.mulf %103, %113 : vector<3x256xf32>
    %cst_35 = arith.constant 1.000000e+00 : f32
    %122 = vector.broadcast %cst_35 : f32 to vector<3x256xf32>
    %123 = arith.subf %122, %103 : vector<3x256xf32>
    %124 = arith.mulf %123, %120 : vector<3x256xf32>
    %125 = arith.addf %121, %124 : vector<3x256xf32>
    %cst_36 = arith.constant 0.000000e+00 : f32
    %126 = vector.broadcast %cst_36 : f32 to vector<3x256xf32>
    %127 = arith.subf %126, %125 : vector<3x256xf32>
    %cst_37 = arith.constant dense<0.000000e+00> : vector<256xf32>
    %128 = vector.multi_reduction <add>, %127, %cst_37 [0] : vector<3x256xf32> to vector<256xf32>
    %129 = vector.shape_cast %128 : vector<256xf32> to vector<1x256xf32>
    %c0_38 = arith.constant 0 : index
    %c0_39 = arith.constant 0 : index
    %130 = vector.load %arg9[%c0_38, %c0_39] : memref<1x256xf32, #tpu.memory_space<vmem>>, vector<1x256xf32>
    tpu.vector_store %arg9[%c0_38, %c0_39], %129 {strides = array<i32>} : memref<1x256xf32, #tpu.memory_space<vmem>>, vector<1x256xf32>,
    return
  }
  func.func @transform_0(%arg0: i32) -> (i32, i32) {
    %c0_i32 = arith.constant 0 : i32
    %c0_i32_0 = arith.constant 0 : i32
    return %c0_i32, %arg0 : i32, i32
  }
  func.func @transform_1(%arg0: i32) -> (i32, i32) {
    %c0_i32 = arith.constant 0 : i32
    %c0_i32_0 = arith.constant 0 : i32
    return %c0_i32, %arg0 : i32, i32
  }
  func.func @transform_2(%arg0: i32) -> (i32, i32) {
    %c0_i32 = arith.constant 0 : i32
    %c0_i32_0 = arith.constant 0 : i32
    %c0_i32_1 = arith.constant 0 : i32
    return %c0_i32, %c0_i32_0 : i32, i32
  }
  func.func @transform_3(%arg0: i32) -> (i32, i32) {
    %c0_i32 = arith.constant 0 : i32
    %c0_i32_0 = arith.constant 0 : i32
    %c0_i32_1 = arith.constant 0 : i32
    return %c0_i32, %c0_i32_0 : i32, i32
  }
  func.func @transform_4(%arg0: i32) -> (i32, i32) {
    %c0_i32 = arith.constant 0 : i32
    %c0_i32_0 = arith.constant 0 : i32
    %c0_i32_1 = arith.constant 0 : i32
    return %c0_i32, %c0_i32_0 : i32, i32
  }
  func.func @transform_5(%arg0: i32) -> (i32, i32) {
    %c0_i32 = arith.constant 0 : i32
    %c0_i32_0 = arith.constant 0 : i32
    %c0_i32_1 = arith.constant 0 : i32
    return %c0_i32, %c0_i32_0 : i32, i32
  }
  func.func @transform_6(%arg0: i32) -> (i32, i32) {
    %c0_i32 = arith.constant 0 : i32
    %c0_i32_0 = arith.constant 0 : i32
    %c0_i32_1 = arith.constant 0 : i32
    return %c0_i32, %c0_i32_0 : i32, i32
  }
  func.func @transform_7(%arg0: i32) -> (i32, i32) {
    %c0_i32 = arith.constant 0 : i32
    %c0_i32_0 = arith.constant 0 : i32
    return %c0_i32, %arg0 : i32, i32
  }
  func.func @transform_8(%arg0: i32) -> (i32, i32) {
    %c0_i32 = arith.constant 0 : i32
    %c0_i32_0 = arith.constant 0 : i32
    return %c0_i32, %arg0 : i32, i32
  }
}

</mosaic_0001>

<llo_original>
// kernel: tpu_custom_call.1
$region0: #{tpu_custom_call.1}
  #allocation0 [shape = 'u32[]', space=smem, size = 0x4, offset = 0x4, fixed_abs, tag = 'smem constant byte address 0x4 - core index']
  #allocation1 [shape = 'u32[144,128]{1,0:T(1,128)}', space=vmem, size = 0x12000, scoped, tag = 'internal scratch']
  %s0 = inlined_call_operand.vmem [shape: bf16[32,512], index: 0, kind: input, shape index: {}]
  %s1 = inlined_call_operand.vmem [shape: f32[3,512], index: 1, kind: input, shape index: {}]
  %s2 = inlined_call_operand.vmem [shape: bf16[64,32], index: 2, kind: input, shape index: {}]
  %s3 = inlined_call_operand.vmem [shape: bf16[64,16], index: 3, kind: input, shape index: {}]
  %s4 = inlined_call_operand.vmem [shape: f32[64,1], index: 4, kind: input, shape index: {}]
  %s5 = inlined_call_operand.vmem [shape: bf16[3,16], index: 5, kind: input, shape index: {}]
  %s6 = inlined_call_operand.vmem [shape: f32[3,1], index: 6, kind: input, shape index: {}]
  %s7 = inlined_call_operand.hbm [shape: f32[3,512], index: 7, kind: output, shape index: {0}]
  %s8 = inlined_call_operand.hbm [shape: f32[1,512], index: 8, kind: output, shape index: {1}]
  %9 = xla_tuple %s7, %s8
  %s10 = sld [smem:[#allocation0]]
  $region107: #{tpu_custom_call.1} parent=0
    _
  %s12 = ssub.s32 1, %s10
  %s13 = scalar_select 0, %s12, %s10
  $region1: #{tpu_custom_call.1} parent=0
    #allocation2 [shape = 'u8[32768]{0}', space=vmem, size = 0x8000, scoped, tag = 'input window, operand 0']
    #allocation3 [shape = 'u8[8192]{0}', space=vmem, size = 0x2000, scoped, tag = 'output window, operand 0']
    #allocation4 [shape = 's32[2]{0}', space=sflag, size = 0x8, scoped, tag = 'scoped memory for tpu_custom_call.1']
    #allocation5 [shape = 'u8[2048]{0}', space=vmem, size = 0x800, scoped, tag = 'output window, operand 1']
    #allocation6 [shape = 's32[2]{0}', space=sflag, size = 0x8, scoped, tag = 'scoped memory for tpu_custom_call.1']
    %14 = vsyncpa [#allocation4], 0
    %s15 = scalar_lea.sflag [#allocation4], 1
    %16 = vsyncpa %s15, 0
    %17 = vsyncpa [#allocation6], 0
    %s18 = scalar_lea.sflag [#allocation6], 1
    %19 = vsyncpa %s18, 0
    loop: start=0, step=1, limit=4
    $region2: #{tpu_custom_call.1} parent=1 // loop_pre_header
      _
    $region3: #{tpu_custom_call.1} parent=1 // loop_header
      %s21 = sphi 0, %s25
      %p22 = scmp.ge.s32.totalorder %s21, 4
      %s31 = sphi 0, %s33
      %s34 = sphi 0, %s31
      %s35 = sphi 0, %s34
      %s51 = sphi 0, %s35
      %s57 = sphi 0, %s59
      %s60 = sphi 0, %s57
      %s61 = sphi 0, %s60
      %s77 = sphi 0, %s61
      %s81 = sphi 0, %s81
      %s83 = sphi 0, %s81
      %s84 = sphi 0, %s83
      %s98 = sphi 0, %s84
      %s102 = sphi 0, %s102
      %s104 = sphi 0, %s102
      %s105 = sphi 0, %s104
      %s119 = sphi 0, %s105
      %s123 = sphi 0, %s123
      %s125 = sphi 0, %s123
      %s126 = sphi 0, %s125
      %s140 = sphi 0, %s126
      %s144 = sphi 0, %s144
      %s146 = sphi 0, %s144
      %s147 = sphi 0, %s146
      %s161 = sphi 0, %s147
      %s165 = sphi 0, %s165
      %s167 = sphi 0, %s165
      %s168 = sphi 0, %s167
      %s182 = sphi 0, %s168
      %s188 = sphi 0, %s190
      %s191 = sphi 0, %s188
      %s192 = sphi 0, %s191
      %s208 = sphi 0, %s192
      %s214 = sphi 0, %s216
      %s217 = sphi 0, %s214
      %s218 = sphi 0, %s217
      %s234 = sphi 0, %s218
    $region4: #{tpu_custom_call.1} parent=1 // loop_header_branch
      %24 = sbr.rel (%p22) target = $region8
    $region5: #{tpu_custom_call.1} parent=1 // loop_body
      %s26 = ssub.s32 %s21, 1
      %s27 = ssub.s32 %s21, 2
      %s28 = sadd.s32 %s21, 1
      %s29 = ssub.s32 %s21, %s28
      %p30 = scmp.eq.s32.totalorder %s29, 0
      %s32 = sadd.s32 %s31, 1
      %s33 = scalar_select %p30, %s31, %s32
      %p36 = pneg %p30
      %p37 = scmp.eq.s32.totalorder %s21, 1
      %p38 = por %p36, %p37
      %p39 = scmp.ne.s32.totalorder %s31, %s34
      %p40 = scmp.eq.s32.totalorder %s21, 0
      %p41 = por %p39, %p40
      %p42 = scmp.ne.s32.totalorder %s31, %s34
      %p43 = scmp.eq.s32.totalorder %s26, 1
      %p44 = por %p42, %p43
      %p45 = scmp.ne.s32.totalorder %s34, %s35
      %p46 = scmp.eq.s32.totalorder %s26, 0
      %p47 = por %p45, %p46
      %p48 = scmp.ne.s32.totalorder %s34, %s35
      %p49 = scmp.eq.s32.totalorder %s27, 1
      %p50 = por %p48, %p49
      %p52 = scmp.ne.s32.totalorder %s35, %s51
      %p53 = scmp.eq.s32.totalorder %s27, 0
      %p54 = por %p52, %p53
      %s55 = ssub.s32 %s21, %s28
      %p56 = scmp.eq.s32.totalorder %s55, 0
      %s58 = sadd.s32 %s57, 1
      %s59 = scalar_select %p56, %s57, %s58
      %p62 = pneg %p56
      %p63 = scmp.eq.s32.totalorder %s21, 1
      %p64 = por %p62, %p63
      %p65 = scmp.ne.s32.totalorder %s57, %s60
      %p66 = scmp.eq.s32.totalorder %s21, 0
      %p67 = por %p65, %p66
      %p68 = scmp.ne.s32.totalorder %s57, %s60
      %p69 = scmp.eq.s32.totalorder %s26, 1
      %p70 = por %p68, %p69
      %p71 = scmp.ne.s32.totalorder %s60, %s61
      %p72 = scmp.eq.s32.totalorder %s26, 0
      %p73 = por %p71, %p72
      %p74 = scmp.ne.s32.totalorder %s60, %s61
      %p75 = scmp.eq.s32.totalorder %s27, 1
      %p76 = por %p74, %p75
      %p78 = scmp.ne.s32.totalorder %s61, %s77
      %p79 = scmp.eq.s32.totalorder %s27, 0
      %p80 = por %p78, %p79
      %s82 = sadd.s32 %s81, 1
      %p85 = scmp.eq.s32.totalorder %s21, 1
      %p86 = scmp.ne.s32.totalorder %s81, %s83
      %p87 = scmp.eq.s32.totalorder %s21, 0
      %p88 = por %p86, %p87
      %p89 = scmp.ne.s32.totalorder %s81, %s83
      %p90 = scmp.eq.s32.totalorder %s26, 1
      %p91 = por %p89, %p90
      %p92 = scmp.ne.s32.totalorder %s83, %s84
      %p93 = scmp.eq.s32.totalorder %s26, 0
      %p94 = por %p92, %p93
      %p95 = scmp.ne.s32.totalorder %s83, %s84
      %p96 = scmp.eq.s32.totalorder %s27, 1
      %p97 = por %p95, %p96
      %p99 = scmp.ne.s32.totalorder %s84, %s98
      %p100 = scmp.eq.s32.totalorder %s27, 0
      %p101 = por %p99, %p100
      %s103 = sadd.s32 %s102, 1
      %p106 = scmp.eq.s32.totalorder %s21, 1
      %p107 = scmp.ne.s32.totalorder %s102, %s104
      %p108 = scmp.eq.s32.totalorder %s21, 0
      %p109 = por %p107, %p108
      %p110 = scmp.ne.s32.totalorder %s102, %s104
      %p111 = scmp.eq.s32.totalorder %s26, 1
      %p112 = por %p110, %p111
      %p113 = scmp.ne.s32.totalorder %s104, %s105
      %p114 = scmp.eq.s32.totalorder %s26, 0
      %p115 = por %p113, %p114
      %p116 = scmp.ne.s32.totalorder %s104, %s105
      %p117 = scmp.eq.s32.totalorder %s27, 1
      %p118 = por %p116, %p117
      %p120 = scmp.ne.s32.totalorder %s105, %s119
      %p121 = scmp.eq.s32.totalorder %s27, 0
      %p122 = por %p120, %p121
      %s124 = sadd.s32 %s123, 1
      %p127 = scmp.eq.s32.totalorder %s21, 1
      %p128 = scmp.ne.s32.totalorder %s123, %s125
      %p129 = scmp.eq.s32.totalorder %s21, 0
      %p130 = por %p128, %p129
      %p131 = scmp.ne.s32.totalorder %s123, %s125
      %p132 = scmp.eq.s32.totalorder %s26, 1
      %p133 = por %p131, %p132
      %p134 = scmp.ne.s32.totalorder %s125, %s126
      %p135 = scmp.eq.s32.totalorder %s26, 0
      %p136 = por %p134, %p135
      %p137 = scmp.ne.s32.totalorder %s125, %s126
      %p138 = scmp.eq.s32.totalorder %s27, 1
      %p139 = por %p137, %p138
      %p141 = scmp.ne.s32.totalorder %s126, %s140
      %p142 = scmp.eq.s32.totalorder %s27, 0
      %p143 = por %p141, %p142
      %s145 = sadd.s32 %s144, 1
      %p148 = scmp.eq.s32.totalorder %s21, 1
      %p149 = scmp.ne.s32.totalorder %s144, %s146
      %p150 = scmp.eq.s32.totalorder %s21, 0
      %p151 = por %p149, %p150
      %p152 = scmp.ne.s32.totalorder %s144, %s146
      %p153 = scmp.eq.s32.totalorder %s26, 1
      %p154 = por %p152, %p153
      %p155 = scmp.ne.s32.totalorder %s146, %s147
      %p156 = scmp.eq.s32.totalorder %s26, 0
      %p157 = por %p155, %p156
      %p158 = scmp.ne.s32.totalorder %s146, %s147
      %p159 = scmp.eq.s32.totalorder %s27, 1
      %p160 = por %p158, %p159
      %p162 = scmp.ne.s32.totalorder %s147, %s161
      %p163 = scmp.eq.s32.totalorder %s27, 0
      %p164 = por %p162, %p163
      %s166 = sadd.s32 %s165, 1
      %p169 = scmp.eq.s32.totalorder %s21, 1
      %p170 = scmp.ne.s32.totalorder %s165, %s167
      %p171 = scmp.eq.s32.totalorder %s21, 0
      %p172 = por %p170, %p171
      %p173 = scmp.ne.s32.totalorder %s165, %s167
      %p174 = scmp.eq.s32.totalorder %s26, 1
      %p175 = por %p173, %p174
      %p176 = scmp.ne.s32.totalorder %s167, %s168
      %p177 = scmp.eq.s32.totalorder %s26, 0
      %p178 = por %p176, %p177
      %p179 = scmp.ne.s32.totalorder %s167, %s168
      %p180 = scmp.eq.s32.totalorder %s27, 1
      %p181 = por %p179, %p180
      %p183 = scmp.ne.s32.totalorder %s168, %s182
      %p184 = scmp.eq.s32.totalorder %s27, 0
      %p185 = por %p183, %p184
      %s186 = ssub.s32 %s21, %s28
      %p187 = scmp.eq.s32.totalorder %s186, 0
      %s189 = sadd.s32 %s188, 1
      %s190 = scalar_select %p187, %s188, %s189
      %p193 = pneg %p187
      %p194 = scmp.eq.s32.totalorder %s21, 1
      %p195 = por %p193, %p194
      %p196 = scmp.ne.s32.totalorder %s188, %s191
      %p197 = scmp.eq.s32.totalorder %s21, 0
      %p198 = por %p196, %p197
      %p199 = scmp.ne.s32.totalorder %s188, %s191
      %p200 = scmp.eq.s32.totalorder %s26, 1
      %p201 = por %p199, %p200
      %p202 = scmp.ne.s32.totalorder %s191, %s192
      %p203 = scmp.eq.s32.totalorder %s26, 0
      %p204 = por %p202, %p203
      %p205 = scmp.ne.s32.totalorder %s191, %s192
      %p206 = scmp.eq.s32.totalorder %s27, 1
      %p207 = por %p205, %p206
      %p209 = scmp.ne.s32.totalorder %s192, %s208
      %p210 = scmp.eq.s32.totalorder %s27, 0
      %p211 = por %p209, %p210
      %s212 = ssub.s32 %s21, %s28
      %p213 = scmp.eq.s32.totalorder %s212, 0
      %s215 = sadd.s32 %s214, 1
      %s216 = scalar_select %p213, %s214, %s215
      %p219 = pneg %p213
      %p220 = scmp.eq.s32.totalorder %s21, 1
      %p221 = por %p219, %p220
      %p222 = scmp.ne.s32.totalorder %s214, %s217
      %p223 = scmp.eq.s32.totalorder %s21, 0
      %p224 = por %p222, %p223
      %p225 = scmp.ne.s32.totalorder %s214, %s217
      %p226 = scmp.eq.s32.totalorder %s26, 1
      %p227 = por %p225, %p226
      %p228 = scmp.ne.s32.totalorder %s217, %s218
      %p229 = scmp.eq.s32.totalorder %s26, 0
      %p230 = por %p228, %p229
      %p231 = scmp.ne.s32.totalorder %s217, %s218
      %p232 = scmp.eq.s32.totalorder %s27, 1
      %p233 = por %p231, %p232
      %p235 = scmp.ne.s32.totalorder %s218, %s234
      %p236 = scmp.eq.s32.totalorder %s27, 0
      %p237 = por %p235, %p236
      %p238 = scmp.le.s32.totalorder 1, %s21
      %p239 = scmp.lt.s32.totalorder %s21, 3
      %p240 = pnand %p238, %p239
      %p241 = pneg %p240
      // Predicated region
      $region9: #{tpu_custom_call.1} parent=5 // pred_check
        _
      $region10: #{tpu_custom_call.1} parent=5 // pred_check_branch
        %243 = sbr.rel (%p240) target = $region12
      $region11: #{tpu_custom_call.1} parent=5 // pred_region
        %s244 = ssub.s32 %s21, 1
        // Predicated region
        $region13: #{tpu_custom_call.1} parent=11 // pred_check
          %p245 = pneg %p94
        $region14: #{tpu_custom_call.1} parent=11 // pred_check_branch
          %247 = sbr.rel (%p245) target = $region16
        $region15: #{tpu_custom_call.1} parent=11 // pred_region
          _
        $region16: #{tpu_custom_call.1} parent=11 // pred_fallthru
          _
        // Predicated region
        $region17: #{tpu_custom_call.1} parent=11 // pred_check
          %p248 = pneg %p115
        $region18: #{tpu_custom_call.1} parent=11 // pred_check_branch
          %250 = sbr.rel (%p248) target = $region20
        $region19: #{tpu_custom_call.1} parent=11 // pred_region
          _
        $region20: #{tpu_custom_call.1} parent=11 // pred_fallthru
          _
        // Predicated region
        $region21: #{tpu_custom_call.1} parent=11 // pred_check
          %p251 = pneg %p136
        $region22: #{tpu_custom_call.1} parent=11 // pred_check_branch
          %253 = sbr.rel (%p251) target = $region24
        $region23: #{tpu_custom_call.1} parent=11 // pred_region
          _
        $region24: #{tpu_custom_call.1} parent=11 // pred_fallthru
          _
        // Predicated region
        $region25: #{tpu_custom_call.1} parent=11 // pred_check
          %p254 = pneg %p157
        $region26: #{tpu_custom_call.1} parent=11 // pred_check_branch
          %256 = sbr.rel (%p254) target = $region28
        $region27: #{tpu_custom_call.1} parent=11 // pred_region
          _
        $region28: #{tpu_custom_call.1} parent=11 // pred_fallthru
          _
        // Predicated region
        $region29: #{tpu_custom_call.1} parent=11 // pred_check
          %p257 = pneg %p178
        $region30: #{tpu_custom_call.1} parent=11 // pred_check_branch
          %259 = sbr.rel (%p257) target = $region32
        $region31: #{tpu_custom_call.1} parent=11 // pred_region
          _
        $region32: #{tpu_custom_call.1} parent=11 // pred_fallthru
          _
      $region12: #{tpu_custom_call.1} parent=5 // pred_fallthru
        _
      %p260 = scmp.lt.s32.totalorder %s21, 2
      // Predicated region
      $region33: #{tpu_custom_call.1} parent=5 // pred_check
        %p261 = pneg %p260
      $region34: #{tpu_custom_call.1} parent=5 // pred_check_branch
        %263 = sbr.rel (%p261) target = $region36
      $region35: #{tpu_custom_call.1} parent=5 // pred_region
        // Predicated region
        $region37: #{tpu_custom_call.1} parent=35 // pred_check
          %p264 = pneg %p41
        $region38: #{tpu_custom_call.1} parent=35 // pred_check_branch
          %266 = sbr.rel (%p264) target = $region40
        $region39: #{tpu_custom_call.1} parent=35 // pred_region
          %s267 = sand.u32 %s31, 1
          %s268 = sand.u32 %s31, 1
          %s269 = smul.addr %s268, 32
          %s270 = scalar_lea.vmem [#allocation2], %s269
          %s271 = smul.u32 2, %s21
          %s272 = smul.addr %s271, 4
          %s273 = scalar_lea.vmem %s0, %s272
          // Predicated region
          $region41: #{tpu_custom_call.1} parent=39 // pred_check
            _
          $region42: #{tpu_custom_call.1} parent=39 // pred_check_branch
            %275 = sbr.rel (0) target = $region44
          $region43: #{tpu_custom_call.1} parent=39 // pred_region
            // Predicated region
            $region45: #{tpu_custom_call.1} parent=43 // pred_check
              _
            $region46: #{tpu_custom_call.1} parent=43 // pred_check_branch
              %277 = sbr.rel (0) target = $region48
            $region47: #{tpu_custom_call.1} parent=43 // pred_region
              // Predicated region
              $region60: #{tpu_custom_call.1} parent=47 // pred_check
                _
              $region61: #{tpu_custom_call.1} parent=47 // pred_check_branch
                %298 = sbr.rel (0) target = $region63
              $region62: #{tpu_custom_call.1} parent=47 // pred_region
                loop: start=0, step=1, limit=1
                $region64: #{tpu_custom_call.1} parent=62 // loop_pre_header
                  _
                $region65: #{tpu_custom_call.1} parent=62 // loop_header
                  %s300 = sphi 0, %s304
                  %p301 = scmp.ge.s32.totalorder %s300, 1
                  %s305 = sphi %s273, %s273
                  %s306 = sphi %s270, %s270
                $region66: #{tpu_custom_call.1} parent=62 // loop_header_branch
                  %303 = sbr.rel (%p301) target = $region70
                $region67: #{tpu_custom_call.1} parent=62 // loop_body
                  %v307 = vld [vmem:[%s305] sm:$0xff]
                  %308 = vst [vmem:[%s306] sm:$0xff] %v307
                  %v309 = vld [vmem:[%s305 + $0x10] sm:$0xff]
                  %310 = vst [vmem:[%s306 + $0x8] sm:$0xff] %v309
                  %v311 = vld [vmem:[%s305 + $0x20] sm:$0xff]
                  %312 = vst [vmem:[%s306 + $0x10] sm:$0xff] %v311
                  %v313 = vld [vmem:[%s305 + $0x30] sm:$0xff]
                  %314 = vst [vmem:[%s306 + $0x18] sm:$0xff] %v313
                $region68: #{tpu_custom_call.1} parent=62 // loop_footer
                  %s304 = sadd.s32 1, %s300
                $region69: #{tpu_custom_call.1} parent=62 // loop_footer_branch
                  %299 = sbr.rel target = $region65
                $region70: #{tpu_custom_call.1} parent=62 // loop_exit
                  _
              $region63: #{tpu_custom_call.1} parent=47 // pred_fallthru
                _
              // Predicated region
              $region71: #{tpu_custom_call.1} parent=47 // pred_check
                _
              $region72: #{tpu_custom_call.1} parent=47 // pred_check_branch
                %316 = sbr.rel target = $region74
              $region73: #{tpu_custom_call.1} parent=47 // pred_region
                _
              $region74: #{tpu_custom_call.1} parent=47 // pred_fallthru
                _
            $region48: #{tpu_custom_call.1} parent=43 // pred_fallthru
              _
            // Predicated region
            $region49: #{tpu_custom_call.1} parent=43 // pred_check
              _
            $region50: #{tpu_custom_call.1} parent=43 // pred_check_branch
              %279 = sbr.rel target = $region52
            $region51: #{tpu_custom_call.1} parent=43 // pred_region
              loop: start=0, step=1, limit=1
              $region53: #{tpu_custom_call.1} parent=51 // loop_pre_header
                _
              $region54: #{tpu_custom_call.1} parent=51 // loop_header
                %s282 = sphi 0, %s286
                %p283 = scmp.ge.s32.totalorder %s282, 1
                %s287 = sphi %s273, %s273
                %s288 = sphi %s270, %s270
              $region55: #{tpu_custom_call.1} parent=51 // loop_header_branch
                %285 = sbr.rel (%p283) target = $region59
              $region56: #{tpu_custom_call.1} parent=51 // loop_body
                %v289 = vld [vmem:[%s287] sm:$0xff]
                %290 = vst [vmem:[%s288] sm:$0xff] %v289
                %v291 = vld [vmem:[%s287 + $0x10] sm:$0xff]
                %292 = vst [vmem:[%s288 + $0x8] sm:$0xff] %v291
                %v293 = vld [vmem:[%s287 + $0x20] sm:$0xff]
                %294 = vst [vmem:[%s288 + $0x10] sm:$0xff] %v293
                %v295 = vld [vmem:[%s287 + $0x30] sm:$0xff]
                %296 = vst [vmem:[%s288 + $0x18] sm:$0xff] %v295
              $region57: #{tpu_custom_call.1} parent=51 // loop_footer
                %s286 = sadd.s32 1, %s282
              $region58: #{tpu_custom_call.1} parent=51 // loop_footer_branch
                %281 = sbr.rel target = $region54
              $region59: #{tpu_custom_call.1} parent=51 // loop_exit
                _
            $region52: #{tpu_custom_call.1} parent=43 // pred_fallthru
              _
          $region44: #{tpu_custom_call.1} parent=39 // pred_fallthru
            _
          %317 = vnop
        $region40: #{tpu_custom_call.1} parent=35 // pred_fallthru
          _
        // Predicated region
        $region75: #{tpu_custom_call.1} parent=35 // pred_check
          %p318 = pneg %p67
        $region76: #{tpu_custom_call.1} parent=35 // pred_check_branch
          %320 = sbr.rel (%p318) target = $region78
        $region77: #{tpu_custom_call.1} parent=35 // pred_region
          %s321 = smul.u32 2, %s21
          %p322 = scmp.lt.s32.totalorder %s321, 3
          %s323 = scalar_select %p322, %s321, 3
          %s324 = smul.addr %s323, 4
          %s325 = scalar_lea.vmem %s1, %s324
          %s326 = smul.u32 2, %s21
        $region78: #{tpu_custom_call.1} parent=35 // pred_fallthru
          _
      $region36: #{tpu_custom_call.1} parent=5 // pred_fallthru
        _
      %p327 = scmp.le.s32.totalorder 1, %s21
      %p328 = scmp.lt.s32.totalorder %s21, 3
      %p329 = pnand %p327, %p328
      %p330 = pneg %p329
      // Predicated region
      $region79: #{tpu_custom_call.1} parent=5 // pred_check
        _
      $region80: #{tpu_custom_call.1} parent=5 // pred_check_branch
        %332 = sbr.rel (%p329) target = $region82
      $region81: #{tpu_custom_call.1} parent=5 // pred_region
        %s333 = ssub.s32 %s21, 1
        %s334 = sand.u32 %s34, 1
        %s335 = sand.u32 %s34, 1
        %s336 = smul.addr %s335, 32
        %s337 = scalar_lea.vmem [#allocation2], %s336
        // Predicated region
        $region83: #{tpu_custom_call.1} parent=81 // pred_check
          %p338 = pneg %p47
        $region84: #{tpu_custom_call.1} parent=81 // pred_check_branch
          %340 = sbr.rel (%p338) target = $region86
        $region85: #{tpu_custom_call.1} parent=81 // pred_region
          _
        $region86: #{tpu_custom_call.1} parent=81 // pred_fallthru
          _
        %s341 = sand.u32 %s34, 1
        %s342 = sand.u32 %s34, 1
        %s343 = smul.addr %s342, 32
        %s344 = scalar_lea.vmem [#allocation2], %s343
        %p345 = pneg %p47
        %p346 = pneg %p44
        %s347 = smul.u32 2, %s26
        %p348 = scmp.lt.s32.totalorder %s347, 3
        %s349 = scalar_select %p348, %s347, 3
        %s350 = smul.addr %s349, 4
        %s351 = scalar_lea.vmem %s1, %s350
        %p352 = pneg %p73
        %p353 = pneg %p70
        %p354 = pneg %p94
        %p355 = pneg %p91
        %p356 = pneg %p115
        %p357 = pneg %p112
        %p358 = pneg %p136
        %p359 = pneg %p133
        %p360 = pneg %p157
        %p361 = pneg %p154
        %p362 = pneg %p178
        %p363 = pneg %p175
        %p364 = pneg %p204
        %p365 = pneg %p201
        %s366 = sand.u32 %s191, 1
        %s367 = scalar_lea.sflag [#allocation4], %s366
        %s368 = sand.u32 %s191, 1
        %s369 = smul.addr %s368, 8
        %s370 = scalar_lea.vmem [#allocation3], %s369
        %p371 = pneg %p230
        %p372 = pneg %p227
        %s373 = sand.u32 %s217, 1
        %s374 = scalar_lea.sflag [#allocation6], %s373
        %s375 = sand.u32 %s217, 1
        %s376 = smul.addr %s375, 2
        %s377 = scalar_lea.vmem [#allocation5], %s376
        %s378 = smul.u32 2, %s26
        %s379 = smul.u32 2, %s26
        %p380 = scmp.lt.s32.totalorder %s379, 3
        %s381 = scalar_select %p380, %s379, 3
        %s382 = smul.addr %s381, 4
        %s383 = scalar_lea.vmem %s1, %s382
        %s384 = smul.u32 2, %s26
        %s385 = smul.u32 2, %s26
        %s386 = smul.u32 2, %s26
        %v388 = vld [vmem:[%s337] sm:$0xff]
        %v389 = vld [vmem:[%s337 + $0x8] sm:$0xff]
        %v390 = vld [vmem:[%s337 + $0x10] sm:$0xff]
        %v391 = vld [vmem:[%s337 + $0x18] sm:$0xff]
        %v392 = vld [vmem:[%s2] sm:$0xf]
        %v393 = vld [vmem:[%s2 + $0x4] sm:$0xf]
        %v394 = vld [vmem:[%s2 + $0x8] sm:$0xf]
        %v395 = vld [vmem:[%s2 + $0xc] sm:$0xf]
        %v396 = vld [vmem:[%s2 + $0x10] sm:$0xf]
        %v397 = vld [vmem:[%s2 + $0x14] sm:$0xf]
        %v398 = vld [vmem:[%s2 + $0x18] sm:$0xf]
        %v399 = vld [vmem:[%s2 + $0x1c] sm:$0xf]
        %v400 = vld [vmem:[%s3] sm:$0xf]
        %v401 = vld [vmem:[%s3 + $0x4] sm:$0xf]
        %v402 = vld [vmem:[%s3 + $0x8] sm:$0xf]
        %v403 = vld [vmem:[%s3 + $0xc] sm:$0xf]
        %v404 = vld [vmem:[%s3 + $0x10] sm:$0xf]
        %v405 = vld [vmem:[%s3 + $0x14] sm:$0xf]
        %v406 = vld [vmem:[%s3 + $0x18] sm:$0xf]
        %v407 = vld [vmem:[%s3 + $0x1c] sm:$0xf]
        %v408 = vld [vmem:[%s4] sm:$0xff]
        %v409 = vld [vmem:[%s4 + $0x8] sm:$0xff]
        %v410 = vld [vmem:[%s4 + $0x10] sm:$0xff]
        %v411 = vld [vmem:[%s4 + $0x18] sm:$0xff]
        %v412 = vld [vmem:[%s4 + $0x20] sm:$0xff]
        %v413 = vld [vmem:[%s4 + $0x28] sm:$0xff]
        %v414 = vld [vmem:[%s4 + $0x30] sm:$0xff]
        %v415 = vld [vmem:[%s4 + $0x38] sm:$0xff]
        %v416 = vld [vmem:[%s5] sm:$0x3]
        %v417 = vld [vmem:[%s6] sm:$0x7]
        %419 = vset.pattern.permute.xlu0 0
        %420 = vperm.xlu0 %419, %v408
        %v421 = vpop.permute.xlu0 %420
        %424 = vset.pattern.permute.xlu0 0
        %425 = vperm.xlu0 %424, %v409
        %v426 = vpop.permute.xlu0 %425
        %429 = vset.pattern.permute.xlu0 0
        %430 = vperm.xlu0 %429, %v410
        %v431 = vpop.permute.xlu0 %430
        %434 = vset.pattern.permute.xlu0 0
        %435 = vperm.xlu0 %434, %v411
        %v436 = vpop.permute.xlu0 %435
        %439 = vset.pattern.permute.xlu0 0
        %440 = vperm.xlu0 %439, %v412
        %v441 = vpop.permute.xlu0 %440
        %444 = vset.pattern.permute.xlu0 0
        %445 = vperm.xlu0 %444, %v413
        %v446 = vpop.permute.xlu0 %445
        %449 = vset.pattern.permute.xlu0 0
        %450 = vperm.xlu0 %449, %v414
        %v451 = vpop.permute.xlu0 %450
        %454 = vset.pattern.permute.xlu0 0
        %455 = vperm.xlu0 %454, %v415
        %v456 = vpop.permute.xlu0 %455
        %v466 = vunpack.c.l.b16 %v392
        %v467 = vunpack.c.l.b16 %v393
        %v468 = vunpack.c.l.b16 %v394
        %v469 = vunpack.c.l.b16 %v395
        %v470 = vunpack.c.l.b16 %v396
        %v471 = vunpack.c.l.b16 %v397
        %v472 = vunpack.c.l.b16 %v398
        %v473 = vunpack.c.l.b16 %v399
        %v474 = vpack.c.b16 %v467, %v466
        %v475 = vpack.c.b16 %v469, %v468
        %v476 = vpack.c.b16 %v471, %v470
        %v477 = vpack.c.b16 %v473, %v472
        %v482 = vunpack.c.l.b16 %v388
        %v483 = vunpack.c.h.b16 %v388
        %v484 = vunpack.c.l.b16 %v389
        %v485 = vunpack.c.h.b16 %v389
        %v486 = vunpack.c.l.b16 %v390
        %v487 = vunpack.c.h.b16 %v390
        %v488 = vunpack.c.l.b16 %v391
        %v489 = vunpack.c.h.b16 %v391
        %v490 = vpack.c.b16 %v484, %v482
        %v491 = vpack.c.b16 %v485, %v483
        %v492 = vpack.c.b16 %v488, %v486
        %v493 = vpack.c.b16 %v489, %v487
        %vm498 = vcmask 261120
        %v500 = vsel %vm498, %v474, 0
        %v503 = vsel %vm498, %v475, 0
        %v506 = vsel %vm498, %v476, 0
        %v509 = vsel %vm498, %v477, 0
        %511 = vmatprep.subr.bf16.mxu0 %v491
        %512 = vmatpush1.bf16.msra.mxu0 %v490
        %513 = vmatprep.subr.bf16.mxu0 %v493
        %514 = vmatpush1.bf16.msra.mxu0 %v492
        %515 = vmatprep.subr.bf16.mxu0 0
        %516 = vmatpush1.bf16.msra.mxu0 0
        %517 = vmatprep.subr.bf16.mxu0 0
        %518 = vmatpush1.bf16.msra.mxu0 0
        %519 = vmatprep.subr.bf16.mxu0 0
        %520 = vmatpush1.bf16.msra.mxu0 0
        %521 = vmatprep.subr.bf16.mxu0 0
        %522 = vmatpush1.bf16.msra.mxu0 0
        %523 = vmatprep.subr.bf16.mxu0 0
        %524 = vmatpush1.bf16.msra.mxu0 0
        %525 = vmatprep.subr.bf16.mxu0 0
        %526 = vmatpush1.bf16.msra.mxu0 0
        %527 = vmatprep.subr.bf16.mxu0 0
        %528 = vmatpush1.bf16.msra.mxu0 0
        %529 = vmatprep.subr.bf16.mxu0 0
        %530 = vmatpush1.bf16.msra.mxu0 0
        %531 = vmatprep.subr.bf16.mxu0 0
        %532 = vmatpush1.bf16.msra.mxu0 0
        %533 = vmatprep.subr.bf16.mxu0 0
        %534 = vmatpush1.bf16.msra.mxu0 0
        %535 = vmatprep.subr.bf16.mxu0 0
        %536 = vmatpush1.bf16.msra.mxu0 0
        %537 = vmatprep.subr.bf16.mxu0 0
        %538 = vmatpush1.bf16.msra.mxu0 0
        %539 = vmatprep.subr.bf16.mxu0 0
        %540 = vmatpush1.bf16.msra.mxu0 0
        %541 = vmatprep.subr.bf16.mxu0 0
        %542 = vmatpush1.bf16.msra.mxu0 0
        %543 = vmatprep.mubr.bf16.mxu0 0
        %544 = vmatmul.mubr.bf16.gmra.mrb[0].mxu0 %v500
        %v545 = vpop.f32.mrb[0].mxu0
        %v546 = vadd.f32 %v421, %v545
        %v547 = vpop.f32.mrb[0].mxu0
        %v548 = vadd.f32 %v421, %v547
        %v549 = vpop.f32.mrb[0].mxu0
        %v550 = vadd.f32 %v426, %v549
        %v551 = vpop.f32.mrb[0].mxu0
        %v552 = vadd.f32 %v426, %v551
        %553 = vmatprep.mubr.bf16.mxu0 0
        %554 = vmatmul.mubr.bf16.gmra.mrb[0].mxu0 %v503
        %v555 = vpop.f32.mrb[0].mxu0
        %v556 = vadd.f32 %v431, %v555
        %v557 = vpop.f32.mrb[0].mxu0
        %v558 = vadd.f32 %v431, %v557
        %v559 = vpop.f32.mrb[0].mxu0
        %v560 = vadd.f32 %v436, %v559
        %v561 = vpop.f32.mrb[0].mxu0
        %v562 = vadd.f32 %v436, %v561
        %563 = vmatprep.mubr.bf16.mxu0 0
        %564 = vmatmul.mubr.bf16.gmra.mrb[0].mxu0 %v506
        %v565 = vpop.f32.mrb[0].mxu0
        %v566 = vadd.f32 %v441, %v565
        %v567 = vpop.f32.mrb[0].mxu0
        %v568 = vadd.f32 %v441, %v567
        %v569 = vpop.f32.mrb[0].mxu0
        %v570 = vadd.f32 %v446, %v569
        %v571 = vpop.f32.mrb[0].mxu0
        %v572 = vadd.f32 %v446, %v571
        %573 = vmatprep.mubr.bf16.mxu0 0
        %574 = vmatmul.mubr.bf16.gmra.mrb[0].mxu0 %v509
        %v575 = vpop.f32.mrb[0].mxu0
        %v576 = vadd.f32 %v451, %v575
        %v577 = vpop.f32.mrb[0].mxu0
        %v578 = vadd.f32 %v451, %v577
        %v579 = vpop.f32.mrb[0].mxu0
        %v580 = vadd.f32 %v456, %v579
        %v581 = vpop.f32.mrb[0].mxu0
        %v582 = vadd.f32 %v456, %v581
        %583 = vdwg.mxu0
        %v584 = vxor.u32 %v556, 2147483648
        %v585 = vxor.u32 %v558, 2147483648
        %v586 = vxor.u32 %v560, 2147483648
        %v587 = vxor.u32 %v562, 2147483648
        %v588 = vmul.f32 %v584, 1.442695
        %v589 = vpow.pop %v588
        %v590 = vmul.f32 %v585, 1.442695
        %v591 = vpow.pop %v590
        %v592 = vmul.f32 %v586, 1.442695
        %v593 = vpow.pop %v592
        %v594 = vmul.f32 %v587, 1.442695
        %v595 = vpow.pop %v594
        %v596 = vadd.f32 %v589, 1.0
        %v597 = vadd.f32 %v591, 1.0
        %v598 = vadd.f32 %v593, 1.0
        %v599 = vadd.f32 %v595, 1.0
        %v600 = vrcp.pop %v596
        %v601 = vmul.f32 1.0, %v600
        %v602 = vrcp.pop %v597
        %v603 = vmul.f32 1.0, %v602
        %v604 = vrcp.pop %v598
        %v605 = vmul.f32 1.0, %v604
        %v606 = vrcp.pop %v599
        %v607 = vmul.f32 1.0, %v606
        %v608 = vmul.f32 %v601, 0.0
        %v609 = vmul.f32 %v603, 0.0
        %v610 = vmul.f32 %v605, 0.0
        %v611 = vmul.f32 %v607, 0.0
        %v612 = vxor.u32 %v546, 2147483648
        %v613 = vxor.u32 %v548, 2147483648
        %v614 = vxor.u32 %v550, 2147483648
        %v615 = vxor.u32 %v552, 2147483648
        %v616 = vmul.f32 %v612, 1.442695
        %v617 = vpow.pop %v616
        %v618 = vmul.f32 %v613, 1.442695
        %v619 = vpow.pop %v618
        %v620 = vmul.f32 %v614, 1.442695
        %v621 = vpow.pop %v620
        %v622 = vmul.f32 %v615, 1.442695
        %v623 = vpow.pop %v622
        %v624 = vadd.f32 %v617, 1.0
        %v625 = vadd.f32 %v619, 1.0
        %v626 = vadd.f32 %v621, 1.0
        %v627 = vadd.f32 %v623, 1.0
        %v628 = vrcp.pop %v624
        %v629 = vmul.f32 1.0, %v628
        %v630 = vrcp.pop %v625
        %v631 = vmul.f32 1.0, %v630
        %v632 = vrcp.pop %v626
        %v633 = vmul.f32 1.0, %v632
        %v634 = vrcp.pop %v627
        %v635 = vmul.f32 1.0, %v634
        %v636 = vtanh.pop %v576
        %v637 = vtanh.pop %v578
        %v638 = vtanh.pop %v580
        %v639 = vtanh.pop %v582
        %v640 = vmul.f32 %v629, %v636
        %v641 = vmul.f32 %v631, %v637
        %v642 = vmul.f32 %v633, %v638
        %v643 = vmul.f32 %v635, %v639
        %v644 = vadd.f32 %v608, %v640
        %v645 = vadd.f32 %v609, %v641
        %v646 = vadd.f32 %v610, %v642
        %v647 = vadd.f32 %v611, %v643
        %v648 = vxor.u32 %v566, 2147483648
        %v649 = vxor.u32 %v568, 2147483648
        %v650 = vxor.u32 %v570, 2147483648
        %v651 = vxor.u32 %v572, 2147483648
        %v652 = vmul.f32 %v648, 1.442695
        %v653 = vpow.pop %v652
        %v654 = vmul.f32 %v649, 1.442695
        %v655 = vpow.pop %v654
        %v656 = vmul.f32 %v650, 1.442695
        %v657 = vpow.pop %v656
        %v658 = vmul.f32 %v651, 1.442695
        %v659 = vpow.pop %v658
        %v660 = vadd.f32 %v653, 1.0
        %v661 = vadd.f32 %v655, 1.0
        %v662 = vadd.f32 %v657, 1.0
        %v663 = vadd.f32 %v659, 1.0
        %v664 = vrcp.pop %v660
        %v665 = vmul.f32 1.0, %v664
        %v666 = vrcp.pop %v661
        %v667 = vmul.f32 1.0, %v666
        %v668 = vrcp.pop %v662
        %v669 = vmul.f32 1.0, %v668
        %v670 = vrcp.pop %v663
        %v671 = vmul.f32 1.0, %v670
        %v672 = vtanh.pop %v644
        %v673 = vtanh.pop %v645
        %v674 = vtanh.pop %v646
        %v675 = vtanh.pop %v647
        %v676 = vmul.f32 %v665, %v672
        %v677 = vmul.f32 %v667, %v673
        %v678 = vmul.f32 %v669, %v674
        %v679 = vmul.f32 %v671, %v675
        %v680 = vpack.c.bf16 %v678, %v676
        %v681 = vpack.c.bf16 %v679, %v677
        %v690 = vunpack.c.l.b16 %v400
        %v691 = vunpack.c.l.b16 %v401
        %v692 = vunpack.c.l.b16 %v402
        %v693 = vunpack.c.l.b16 %v403
        %v694 = vunpack.c.l.b16 %v404
        %v695 = vunpack.c.l.b16 %v405
        %v696 = vunpack.c.l.b16 %v406
        %v697 = vunpack.c.l.b16 %v407
        %v698 = vpack.c.b16 %v691, %v690
        %v699 = vpack.c.b16 %v693, %v692
        %v700 = vpack.c.b16 %v695, %v694
        %v701 = vpack.c.b16 %v697, %v696
        %vm702 = vcmask 130048
        %v704 = vsel %vm702, %v698, 0
        %v707 = vsel %vm702, %v699, 0
        %v710 = vsel %vm702, %v700, 0
        %v713 = vsel %vm702, %v701, 0
        %715 = vmatprep.subr.bf16.mxu0 %v681
        %716 = vmatpush1.bf16.msra.mxu0 %v680
        %717 = vmatprep.subr.bf16.mxu0 0
        %718 = vmatpush1.bf16.msra.mxu0 0
        %719 = vmatprep.subr.bf16.mxu0 0
        %720 = vmatpush1.bf16.msra.mxu0 0
        %721 = vmatprep.subr.bf16.mxu0 0
        %722 = vmatpush1.bf16.msra.mxu0 0
        %723 = vmatprep.subr.bf16.mxu0 0
        %724 = vmatpush1.bf16.msra.mxu0 0
        %725 = vmatprep.subr.bf16.mxu0 0
        %726 = vmatpush1.bf16.msra.mxu0 0
        %727 = vmatprep.subr.bf16.mxu0 0
        %728 = vmatpush1.bf16.msra.mxu0 0
        %729 = vmatprep.subr.bf16.mxu0 0
        %730 = vmatpush1.bf16.msra.mxu0 0
        %731 = vmatprep.subr.bf16.mxu0 0
        %732 = vmatpush1.bf16.msra.mxu0 0
        %733 = vmatprep.subr.bf16.mxu0 0
        %734 = vmatpush1.bf16.msra.mxu0 0
        %735 = vmatprep.subr.bf16.mxu0 0
        %736 = vmatpush1.bf16.msra.mxu0 0
        %737 = vmatprep.subr.bf16.mxu0 0
        %738 = vmatpush1.bf16.msra.mxu0 0
        %739 = vmatprep.subr.bf16.mxu0 0
        %740 = vmatpush1.bf16.msra.mxu0 0
        %741 = vmatprep.subr.bf16.mxu0 0
        %742 = vmatpush1.bf16.msra.mxu0 0
        %743 = vmatprep.subr.bf16.mxu0 0
        %744 = vmatpush1.bf16.msra.mxu0 0
        %745 = vmatprep.subr.bf16.mxu0 0
        %746 = vmatpush1.bf16.msra.mxu0 0
        %747 = vmatprep.mubr.bf16.mxu0 0
        %748 = vmatmul.mubr.bf16.gmra.mrb[0].mxu0 %v704
        %v749 = vpop.f32.mrb[0].mxu0
        %v750 = vadd.f32 0.0, %v749
        %v751 = vpop.f32.mrb[0].mxu0
        %v752 = vadd.f32 0.0, %v751
        %v753 = vpop.f32.mrb[0].mxu0
        %v754 = vadd.f32 0.0, %v753
        %v755 = vpop.f32.mrb[0].mxu0
        %v756 = vadd.f32 0.0, %v755
        %757 = vmatprep.mubr.bf16.mxu0 0
        %758 = vmatmul.mubr.bf16.gmra.mrb[0].mxu0 %v707
        %v759 = vpop.f32.mrb[0].mxu0
        %v760 = vadd.f32 0.0, %v759
        %v761 = vpop.f32.mrb[0].mxu0
        %v762 = vadd.f32 0.0, %v761
        %v763 = vpop.f32.mrb[0].mxu0
        %v764 = vadd.f32 0.0, %v763
        %v765 = vpop.f32.mrb[0].mxu0
        %v766 = vadd.f32 0.0, %v765
        %767 = vmatprep.mubr.bf16.mxu0 0
        %768 = vmatmul.mubr.bf16.gmra.mrb[0].mxu0 %v710
        %v769 = vpop.f32.mrb[0].mxu0
        %v770 = vadd.f32 0.0, %v769
        %v771 = vpop.f32.mrb[0].mxu0
        %v772 = vadd.f32 0.0, %v771
        %v773 = vpop.f32.mrb[0].mxu0
        %v774 = vadd.f32 0.0, %v773
        %v775 = vpop.f32.mrb[0].mxu0
        %v776 = vadd.f32 0.0, %v775
        %777 = vmatprep.mubr.bf16.mxu0 0
        %778 = vmatmul.mubr.bf16.gmra.mrb[0].mxu0 %v713
        %v779 = vpop.f32.mrb[0].mxu0
        %v780 = vadd.f32 0.0, %v779
        %v781 = vpop.f32.mrb[0].mxu0
        %v782 = vadd.f32 0.0, %v781
        %v783 = vpop.f32.mrb[0].mxu0
        %v784 = vadd.f32 0.0, %v783
        %v785 = vpop.f32.mrb[0].mxu0
        %v786 = vadd.f32 0.0, %v785
        %787 = vdwg.mxu0
        %v788 = vadd.f32 %v546, %v750
        %v789 = vadd.f32 %v548, %v752
        %v790 = vadd.f32 %v550, %v754
        %v791 = vadd.f32 %v552, %v756
        %v792 = vadd.f32 %v556, %v760
        %v793 = vadd.f32 %v558, %v762
        %v794 = vadd.f32 %v560, %v764
        %v795 = vadd.f32 %v562, %v766
        %v796 = vadd.f32 %v566, %v770
        %v797 = vadd.f32 %v568, %v772
        %v798 = vadd.f32 %v570, %v774
        %v799 = vadd.f32 %v572, %v776
        %v800 = vadd.f32 %v576, %v780
        %v801 = vadd.f32 %v578, %v782
        %v802 = vadd.f32 %v580, %v784
        %v803 = vadd.f32 %v582, %v786
        %v804 = vxor.u32 %v792, 2147483648
        %v805 = vxor.u32 %v793, 2147483648
        %v806 = vxor.u32 %v794, 2147483648
        %v807 = vxor.u32 %v795, 2147483648
        %v808 = vmul.f32 %v804, 1.442695
        %v809 = vpow.pop %v808
        %v810 = vmul.f32 %v805, 1.442695
        %v811 = vpow.pop %v810
        %v812 = vmul.f32 %v806, 1.442695
        %v813 = vpow.pop %v812
        %v814 = vmul.f32 %v807, 1.442695
        %v815 = vpow.pop %v814
        %v816 = vadd.f32 %v809, 1.0
        %v817 = vadd.f32 %v811, 1.0
        %v818 = vadd.f32 %v813, 1.0
        %v819 = vadd.f32 %v815, 1.0
        %v820 = vrcp.pop %v816
        %v821 = vmul.f32 1.0, %v820
        %v822 = vrcp.pop %v817
        %v823 = vmul.f32 1.0, %v822
        %v824 = vrcp.pop %v818
        %v825 = vmul.f32 1.0, %v824
        %v826 = vrcp.pop %v819
        %v827 = vmul.f32 1.0, %v826
        %v828 = vmul.f32 %v821, %v644
        %v829 = vmul.f32 %v823, %v645
        %v830 = vmul.f32 %v825, %v646
        %v831 = vmul.f32 %v827, %v647
        %v832 = vxor.u32 %v788, 2147483648
        %v833 = vxor.u32 %v789, 2147483648
        %v834 = vxor.u32 %v790, 2147483648
        %v835 = vxor.u32 %v791, 2147483648
        %v836 = vmul.f32 %v832, 1.442695
        %v837 = vpow.pop %v836
        %v838 = vmul.f32 %v833, 1.442695
        %v839 = vpow.pop %v838
        %v840 = vmul.f32 %v834, 1.442695
        %v841 = vpow.pop %v840
        %v842 = vmul.f32 %v835, 1.442695
        %v843 = vpow.pop %v842
        %v844 = vadd.f32 %v837, 1.0
        %v845 = vadd.f32 %v839, 1.0
        %v846 = vadd.f32 %v841, 1.0
        %v847 = vadd.f32 %v843, 1.0
        %v848 = vrcp.pop %v844
        %v849 = vmul.f32 1.0, %v848
        %v850 = vrcp.pop %v845
        %v851 = vmul.f32 1.0, %v850
        %v852 = vrcp.pop %v846
        %v853 = vmul.f32 1.0, %v852
        %v854 = vrcp.pop %v847
        %v855 = vmul.f32 1.0, %v854
        %v856 = vtanh.pop %v800
        %v857 = vtanh.pop %v801
        %v858 = vtanh.pop %v802
        %v859 = vtanh.pop %v803
        %v860 = vmul.f32 %v849, %v856
        %v861 = vmul.f32 %v851, %v857
        %v862 = vmul.f32 %v853, %v858
        %v863 = vmul.f32 %v855, %v859
        %v864 = vadd.f32 %v828, %v860
        %v865 = vadd.f32 %v829, %v861
        %v866 = vadd.f32 %v830, %v862
        %v867 = vadd.f32 %v831, %v863
        %v868 = vxor.u32 %v796, 2147483648
        %v869 = vxor.u32 %v797, 2147483648
        %v870 = vxor.u32 %v798, 2147483648
        %v871 = vxor.u32 %v799, 2147483648
        %v872 = vmul.f32 %v868, 1.442695
        %v873 = vpow.pop %v872
        %v874 = vmul.f32 %v869, 1.442695
        %v875 = vpow.pop %v874
        %v876 = vmul.f32 %v870, 1.442695
        %v877 = vpow.pop %v876
        %v878 = vmul.f32 %v871, 1.442695
        %v879 = vpow.pop %v878
        %v880 = vadd.f32 %v873, 1.0
        %v881 = vadd.f32 %v875, 1.0
        %v882 = vadd.f32 %v877, 1.0
        %v883 = vadd.f32 %v879, 1.0
        %v884 = vrcp.pop %v880
        %v885 = vmul.f32 1.0, %v884
        %v886 = vrcp.pop %v881
        %v887 = vmul.f32 1.0, %v886
        %v888 = vrcp.pop %v882
        %v889 = vmul.f32 1.0, %v888
        %v890 = vrcp.pop %v883
        %v891 = vmul.f32 1.0, %v890
        %v892 = vtanh.pop %v864
        %v893 = vtanh.pop %v865
        %v894 = vtanh.pop %v866
        %v895 = vtanh.pop %v867
        %v896 = vmul.f32 %v885, %v892
        %v897 = vmul.f32 %v887, %v893
        %v898 = vmul.f32 %v889, %v894
        %v899 = vmul.f32 %v891, %v895
        %v900 = vadd.f32 %v676, %v896
        %v901 = vadd.f32 %v677, %v897
        %v902 = vadd.f32 %v678, %v898
        %v903 = vadd.f32 %v679, %v899
        %v904 = vpack.c.bf16 %v898, %v896
        %v905 = vpack.c.bf16 %v899, %v897
        %906 = vmatprep.subr.bf16.mxu0 %v905
        %907 = vmatpush1.bf16.msra.mxu0 %v904
        %908 = vmatprep.subr.bf16.mxu0 0
        %909 = vmatpush1.bf16.msra.mxu0 0
        %910 = vmatprep.subr.bf16.mxu0 0
        %911 = vmatpush1.bf16.msra.mxu0 0
        %912 = vmatprep.subr.bf16.mxu0 0
        %913 = vmatpush1.bf16.msra.mxu0 0
        %914 = vmatprep.subr.bf16.mxu0 0
        %915 = vmatpush1.bf16.msra.mxu0 0
        %916 = vmatprep.subr.bf16.mxu0 0
        %917 = vmatpush1.bf16.msra.mxu0 0
        %918 = vmatprep.subr.bf16.mxu0 0
        %919 = vmatpush1.bf16.msra.mxu0 0
        %920 = vmatprep.subr.bf16.mxu0 0
        %921 = vmatpush1.bf16.msra.mxu0 0
        %922 = vmatprep.subr.bf16.mxu0 0
        %923 = vmatpush1.bf16.msra.mxu0 0
        %924 = vmatprep.subr.bf16.mxu0 0
        %925 = vmatpush1.bf16.msra.mxu0 0
        %926 = vmatprep.subr.bf16.mxu0 0
        %927 = vmatpush1.bf16.msra.mxu0 0
        %928 = vmatprep.subr.bf16.mxu0 0
        %929 = vmatpush1.bf16.msra.mxu0 0
        %930 = vmatprep.subr.bf16.mxu0 0
        %931 = vmatpush1.bf16.msra.mxu0 0
        %932 = vmatprep.subr.bf16.mxu0 0
        %933 = vmatpush1.bf16.msra.mxu0 0
        %934 = vmatprep.subr.bf16.mxu0 0
        %935 = vmatpush1.bf16.msra.mxu0 0
        %936 = vmatprep.subr.bf16.mxu0 0
        %937 = vmatpush1.bf16.msra.mxu0 0
        %938 = vmatprep.mubr.bf16.mxu0 0
        %939 = vmatmul.mubr.bf16.gmra.mrb[0].mxu0 %v704
        %v940 = vpop.f32.mrb[0].mxu0
        %v941 = vadd.f32 0.0, %v940
        %v942 = vpop.f32.mrb[0].mxu0
        %v943 = vadd.f32 0.0, %v942
        %v944 = vpop.f32.mrb[0].mxu0
        %v945 = vadd.f32 0.0, %v944
        %v946 = vpop.f32.mrb[0].mxu0
        %v947 = vadd.f32 0.0, %v946
        %948 = vmatprep.mubr.bf16.mxu0 0
        %949 = vmatmul.mubr.bf16.gmra.mrb[0].mxu0 %v707
        %v950 = vpop.f32.mrb[0].mxu0
        %v951 = vadd.f32 0.0, %v950
        %v952 = vpop.f32.mrb[0].mxu0
        %v953 = vadd.f32 0.0, %v952
        %v954 = vpop.f32.mrb[0].mxu0
        %v955 = vadd.f32 0.0, %v954
        %v956 = vpop.f32.mrb[0].mxu0
        %v957 = vadd.f32 0.0, %v956
        %958 = vmatprep.mubr.bf16.mxu0 0
        %959 = vmatmul.mubr.bf16.gmra.mrb[0].mxu0 %v710
        %v960 = vpop.f32.mrb[0].mxu0
        %v961 = vadd.f32 0.0, %v960
        %v962 = vpop.f32.mrb[0].mxu0
        %v963 = vadd.f32 0.0, %v962
        %v964 = vpop.f32.mrb[0].mxu0
        %v965 = vadd.f32 0.0, %v964
        %v966 = vpop.f32.mrb[0].mxu0
        %v967 = vadd.f32 0.0, %v966
        %968 = vmatprep.mubr.bf16.mxu0 0
        %969 = vmatmul.mubr.bf16.gmra.mrb[0].mxu0 %v713
        %v970 = vpop.f32.mrb[0].mxu0
        %v971 = vadd.f32 0.0, %v970
        %v972 = vpop.f32.mrb[0].mxu0
        %v973 = vadd.f32 0.0, %v972
        %v974 = vpop.f32.mrb[0].mxu0
        %v975 = vadd.f32 0.0, %v974
        %v976 = vpop.f32.mrb[0].mxu0
        %v977 = vadd.f32 0.0, %v976
        %978 = vdwg.mxu0
        %v979 = vadd.f32 %v546, %v941
        %v980 = vadd.f32 %v548, %v943
        %v981 = vadd.f32 %v550, %v945
        %v982 = vadd.f32 %v552, %v947
        %v983 = vadd.f32 %v556, %v951
        %v984 = vadd.f32 %v558, %v953
        %v985 = vadd.f32 %v560, %v955
        %v986 = vadd.f32 %v562, %v957
        %v987 = vadd.f32 %v566, %v961
        %v988 = vadd.f32 %v568, %v963
        %v989 = vadd.f32 %v570, %v965
        %v990 = vadd.f32 %v572, %v967
        %v991 = vadd.f32 %v576, %v971
        %v992 = vadd.f32 %v578, %v973
        %v993 = vadd.f32 %v580, %v975
        %v994 = vadd.f32 %v582, %v977
        %v995 = vxor.u32 %v983, 2147483648
        %v996 = vxor.u32 %v984, 2147483648
        %v997 = vxor.u32 %v985, 2147483648
        %v998 = vxor.u32 %v986, 2147483648
        %v999 = vmul.f32 %v995, 1.442695
        %v1000 = vpow.pop %v999
        %v1001 = vmul.f32 %v996, 1.442695
        %v1002 = vpow.pop %v1001
        %v1003 = vmul.f32 %v997, 1.442695
        %v1004 = vpow.pop %v1003
        %v1005 = vmul.f32 %v998, 1.442695
        %v1006 = vpow.pop %v1005
        %v1007 = vadd.f32 %v1000, 1.0
        %v1008 = vadd.f32 %v1002, 1.0
        %v1009 = vadd.f32 %v1004, 1.0
        %v1010 = vadd.f32 %v1006, 1.0
        %v1011 = vrcp.pop %v1007
        %v1012 = vmul.f32 1.0, %v1011
        %v1013 = vrcp.pop %v1008
        %v1014 = vmul.f32 1.0, %v1013
        %v1015 = vrcp.pop %v1009
        %v1016 = vmul.f32 1.0, %v1015
        %v1017 = vrcp.pop %v1010
        %v1018 = vmul.f32 1.0, %v1017
        %v1019 = vmul.f32 %v1012, %v864
        %v1020 = vmul.f32 %v1014, %v865
        %v1021 = vmul.f32 %v1016, %v866
        %v1022 = vmul.f32 %v1018, %v867
        %v1023 = vxor.u32 %v979, 2147483648
        %v1024 = vxor.u32 %v980, 2147483648
        %v1025 = vxor.u32 %v981, 2147483648
        %v1026 = vxor.u32 %v982, 2147483648
        %v1027 = vmul.f32 %v1023, 1.442695
        %v1028 = vpow.pop %v1027
        %v1029 = vmul.f32 %v1024, 1.442695
        %v1030 = vpow.pop %v1029
        %v1031 = vmul.f32 %v1025, 1.442695
        %v1032 = vpow.pop %v1031
        %v1033 = vmul.f32 %v1026, 1.442695
        %v1034 = vpow.pop %v1033
        %v1035 = vadd.f32 %v1028, 1.0
        %v1036 = vadd.f32 %v1030, 1.0
        %v1037 = vadd.f32 %v1032, 1.0
        %v1038 = vadd.f32 %v1034, 1.0
        %v1039 = vrcp.pop %v1035
        %v1040 = vmul.f32 1.0, %v1039
        %v1041 = vrcp.pop %v1036
        %v1042 = vmul.f32 1.0, %v1041
        %v1043 = vrcp.pop %v1037
        %v1044 = vmul.f32 1.0, %v1043
        %v1045 = vrcp.pop %v1038
        %v1046 = vmul.f32 1.0, %v1045
        %v1047 = vtanh.pop %v991
        %v1048 = vtanh.pop %v992
        %v1049 = vtanh.pop %v993
        %v1050 = vtanh.pop %v994
        %v1051 = vmul.f32 %v1040, %v1047
        %v1052 = vmul.f32 %v1042, %v1048
        %v1053 = vmul.f32 %v1044, %v1049
        %v1054 = vmul.f32 %v1046, %v1050
        %v1055 = vadd.f32 %v1019, %v1051
        %v1056 = vadd.f32 %v1020, %v1052
        %v1057 = vadd.f32 %v1021, %v1053
        %v1058 = vadd.f32 %v1022, %v1054
        %v1059 = vxor.u32 %v987, 2147483648
        %v1060 = vxor.u32 %v988, 2147483648
        %v1061 = vxor.u32 %v989, 2147483648
        %v1062 = vxor.u32 %v990, 2147483648
        %v1063 = vmul.f32 %v1059, 1.442695
        %v1064 = vpow.pop %v1063
        %v1065 = vmul.f32 %v1060, 1.442695
        %v1066 = vpow.pop %v1065
        %v1067 = vmul.f32 %v1061, 1.442695
        %v1068 = vpow.pop %v1067
        %v1069 = vmul.f32 %v1062, 1.442695
        %v1070 = vpow.pop %v1069
        %v1071 = vadd.f32 %v1064, 1.0
        %v1072 = vadd.f32 %v1066, 1.0
        %v1073 = vadd.f32 %v1068, 1.0
        %v1074 = vadd.f32 %v1070, 1.0
        %v1075 = vrcp.pop %v1071
        %v1076 = vmul.f32 1.0, %v1075
        %v1077 = vrcp.pop %v1072
        %v1078 = vmul.f32 1.0, %v1077
        %v1079 = vrcp.pop %v1073
        %v1080 = vmul.f32 1.0, %v1079
        %v1081 = vrcp.pop %v1074
        %v1082 = vmul.f32 1.0, %v1081
        %v1083 = vtanh.pop %v1055
        %v1084 = vtanh.pop %v1056
        %v1085 = vtanh.pop %v1057
        %v1086 = vtanh.pop %v1058
        %v1087 = vmul.f32 %v1076, %v1083
        %v1088 = vmul.f32 %v1078, %v1084
        %v1089 = vmul.f32 %v1080, %v1085
        %v1090 = vmul.f32 %v1082, %v1086
        %v1091 = vadd.f32 %v900, %v1087
        %v1092 = vadd.f32 %v901, %v1088
        %v1093 = vadd.f32 %v902, %v1089
        %v1094 = vadd.f32 %v903, %v1090
        %v1095 = vpack.c.bf16 %v1093, %v1091
        %v1096 = vpack.c.bf16 %v1094, %v1092
        %1098 = vset.pattern.permute.xlu0 0
        %1099 = vperm.xlu0 %1098, %v417
        %v1100 = vpop.permute.xlu0 %1099
        %v1103 = vsel %vm702, %v416, 0
        %1105 = vmatprep.subr.bf16.mxu0 %v1096
        %1106 = vmatpush1.bf16.msra.mxu0 %v1095
        %1107 = vmatprep.subr.bf16.mxu0 0
        %1108 = vmatpush1.bf16.msra.mxu0 0
        %1109 = vmatprep.subr.bf16.mxu0 0
        %1110 = vmatpush1.bf16.msra.mxu0 0
        %1111 = vmatprep.subr.bf16.mxu0 0
        %1112 = vmatpush1.bf16.msra.mxu0 0
        %1113 = vmatprep.subr.bf16.mxu0 0
        %1114 = vmatpush1.bf16.msra.mxu0 0
        %1115 = vmatprep.subr.bf16.mxu0 0
        %1116 = vmatpush1.bf16.msra.mxu0 0
        %1117 = vmatprep.subr.bf16.mxu0 0
        %1118 = vmatpush1.bf16.msra.mxu0 0
        %1119 = vmatprep.subr.bf16.mxu0 0
        %1120 = vmatpush1.bf16.msra.mxu0 0
        %1121 = vmatprep.subr.bf16.mxu0 0
        %1122 = vmatpush1.bf16.msra.mxu0 0
        %1123 = vmatprep.subr.bf16.mxu0 0
        %1124 = vmatpush1.bf16.msra.mxu0 0
        %1125 = vmatprep.subr.bf16.mxu0 0
        %1126 = vmatpush1.bf16.msra.mxu0 0
        %1127 = vmatprep.subr.bf16.mxu0 0
        %1128 = vmatpush1.bf16.msra.mxu0 0
        %1129 = vmatprep.subr.bf16.mxu0 0
        %1130 = vmatpush1.bf16.msra.mxu0 0
        %1131 = vmatprep.subr.bf16.mxu0 0
        %1132 = vmatpush1.bf16.msra.mxu0 0
        %1133 = vmatprep.subr.bf16.mxu0 0
        %1134 = vmatpush1.bf16.msra.mxu0 0
        %1135 = vmatprep.subr.bf16.mxu0 0
        %1136 = vmatpush1.bf16.msra.mxu0 0
        %1137 = vmatprep.mubr.bf16.mxu0 0
        %1138 = vmatmul.mubr.bf16.gmra.mrb[0].mxu0 %v1103
        %v1139 = vpop.f32.mrb[0].mxu0
        %v1140 = vadd.f32 %v1100, %v1139
        %v1141 = vpop.f32.mrb[0].mxu0
        %v1142 = vadd.f32 %v1100, %v1141
        %v1143 = vpop.f32.mrb[0].mxu0
        %v1144 = vpop.f32.mrb[0].mxu0
        %1145 = vdwg.mxu0
        %v1146 = vxor.u32 %v1140, 2147483648
        %v1147 = vxor.u32 %v1142, 2147483648
        %v1148 = vmul.f32 %v1146, 1.442695
        %v1149 = vpow.pop %v1148
        %v1150 = vmul.f32 %v1147, 1.442695
        %v1151 = vpow.pop %v1150
        %v1152 = vadd.f32 %v1149, 1.0
        %v1153 = vadd.f32 %v1151, 1.0
        %v1154 = vrcp.pop %v1152
        %v1155 = vmul.f32 1.0, %v1154
        %v1156 = vrcp.pop %v1153
        %v1157 = vmul.f32 1.0, %v1156
        %v1160 = vcombine.low %v1155, %v1157
        %1162 = vst [vmem:[%s370] sm:$0x77] %v1160
        %v1163 = vld [vmem:[%s383] sm:$0x77]
        %v1164 = vand.u32 2147483647, %v1140
        %v1165 = vand.u32 2147483647, %v1142
        %v1166 = vsub.f32 0.0, %v1164
        %v1167 = vsub.f32 0.0, %v1165
        %v1168 = vmul.f32 %v1166, 1.442695
        %v1169 = vpow.pop %v1168
        %v1170 = vmul.f32 %v1167, 1.442695
        %v1171 = vpow.pop %v1170
        %v1172 = vadd.f32 %v1169, 1.0
        %v1173 = vlog2.pop %v1172
        %v1174 = vmul.f32 %v1173, 0.6931472
        %v1175 = vmul.f32 -0.5, %v1169
        %v1176 = vadd.f32 %v1175, 1.0
        %v1177 = vmul.f32 %v1176, %v1169
        %v1178 = vand.u32 2147483647, %v1169
        %vm1179 = vcmp.lt.f32.partialorder %v1178, 0.0004427343
        %v1180 = vsel %vm1179, %v1177, %v1174
        %v1181 = vadd.f32 %v1171, 1.0
        %v1182 = vlog2.pop %v1181
        %v1183 = vmul.f32 %v1182, 0.6931472
        %v1184 = vmul.f32 -0.5, %v1171
        %v1185 = vadd.f32 %v1184, 1.0
        %v1186 = vmul.f32 %v1185, %v1171
        %v1187 = vand.u32 2147483647, %v1171
        %vm1188 = vcmp.lt.f32.partialorder %v1187, 0.0004427343
        %v1189 = vsel %vm1188, %v1186, %v1183
        %v1190 = vmin.f32 %v1140, 0.0
        %v1191 = vmin.f32 %v1142, 0.0
        %v1192 = vsub.f32 %v1190, %v1180
        %v1193 = vsub.f32 %v1191, %v1189
        %v1194 = vmax.f32 %v1192, -100.0
        %v1195 = vmax.f32 %v1193, -100.0
        %v1196 = vsub.f32 0.0, %v1140
        %v1197 = vsub.f32 0.0, %v1142
        %v1198 = vmin.f32 %v1196, 0.0
        %v1199 = vmin.f32 %v1197, 0.0
        %v1200 = vsub.f32 %v1198, %v1180
        %v1201 = vsub.f32 %v1199, %v1189
        %v1202 = vmax.f32 %v1200, -100.0
        %v1203 = vmax.f32 %v1201, -100.0
        %v1206 = vcombine.low %v1194, %v1195
        %v1208 = vmul.f32 %v1163, %v1206
        %v1209 = vsub.f32 1.0, %v1163
        %v1212 = vcombine.low %v1202, %v1203
        %v1214 = vmul.f32 %v1209, %v1212
        %v1215 = vadd.f32 %v1208, %v1214
        %v1216 = vsub.f32 0.0, %v1215
        %v1218 = vcombine.high %v1216, %v1216
        %vm1220 = vcmask 1042432
        %v1221 = vsel %vm1220, %v1216, 0.0
        %v1222 = vrot.slane %v1221, 4
        %v1223 = vadd.f32 %v1221, %v1222
        %v1224 = vrot.slane %v1223, 2
        %v1225 = vadd.f32 %v1223, %v1224
        %v1226 = vrot.slane %v1225, 1
        %v1227 = vadd.f32 %v1225, %v1226
        %v1228 = vsel %vm1220, %v1218, 0.0
        %v1229 = vrot.slane %v1228, 4
        %v1230 = vadd.f32 %v1228, %v1229
        %v1231 = vrot.slane %v1230, 2
        %v1232 = vadd.f32 %v1230, %v1231
        %v1233 = vrot.slane %v1232, 1
        %v1234 = vadd.f32 %v1232, %v1233
        %v1237 = vcombine.low %v1227, %v1234
        %v1239 = vunpack.c.l.s4 1966171168
        %v1240 = vunpack.c.0.s8 %v1239
        %v1241 = vlaneseq
        %v1242 = vshrl.u32 %v1241, 7
        %v1243 = vsub.s32 %v1240, %v1242
        %v1244 = vrot.slane %v1237, %v1243
        %v1246 = vunpack.c.l.s4 1966171168
        %v1247 = vunpack.c.0.s8 %v1246
        %v1248 = vlaneseq
        %v1249 = vshrl.u32 %v1248, 7
        %v1250 = vsub.s32 %v1247, %v1249
        %v1251 = vrot.slane %v1244, %v1250
        %v1253 = vlaneseq
        %vm1254 = vcmp.ge.s32.totalorder %v1253, 0
        %vm1255 = vcmp.lt.s32.totalorder %v1253, 256
        %vm1256 = vmand %vm1254, %vm1255
        %1257 = vst.msk [vmem:[%s377] sm:$0x3] %vm1256, %v1251
        %s1258 = sand.u32 %s191, 1
        %s1259 = scalar_lea.sflag [#allocation4], %s1258
        %s1260 = sand.u32 %s191, 1
        %s1261 = smul.addr %s1260, 8
        %s1262 = scalar_lea.vmem [#allocation3], %s1261
        %s1263 = sand.u32 %s217, 1
        %s1264 = scalar_lea.sflag [#allocation6], %s1263
        %s1265 = sand.u32 %s217, 1
        %s1266 = smul.addr %s1265, 2
        %s1267 = scalar_lea.vmem [#allocation5], %s1266
        // Predicated region
        $region87: #{tpu_custom_call.1} parent=81 // pred_check
          %p1268 = pneg %p201
        $region88: #{tpu_custom_call.1} parent=81 // pred_check_branch
          %1270 = sbr.rel (%p1268) target = $region90
        $region89: #{tpu_custom_call.1} parent=81 // pred_region
          %s1271 = smul.u32 2, %s26
          %s1273 = ssub.s32 128, 128
          %1274 = vsyncadd %s1259, %s1273
          %s1275 = smul.addr %s1271, 64
          %s1276 = scalar_lea.hbm %s7, %s1275
          %s1278 = sshll.u32 %s1262, 4
          %s1279 = int_to_ptr.vmem [resolvable:$true] %s1278
          %1281 = dma.vmem_to_hbm [thread:$0]  %s1279, 128, %s1276, %s1259
        $region90: #{tpu_custom_call.1} parent=81 // pred_fallthru
          _
        // Predicated region
        $region91: #{tpu_custom_call.1} parent=81 // pred_check
          %p1282 = pneg %p227
        $region92: #{tpu_custom_call.1} parent=81 // pred_check_branch
          %1284 = sbr.rel (%p1282) target = $region94
        $region93: #{tpu_custom_call.1} parent=81 // pred_region
          %s1285 = smul.u32 2, %s26
          %s1287 = ssub.s32 32, 32
          %1288 = vsyncadd %s1264, %s1287
          %s1289 = smul.addr %s1285, 16
          %s1290 = scalar_lea.hbm %s8, %s1289
          %s1292 = sshll.u32 %s1267, 4
          %s1293 = int_to_ptr.vmem [resolvable:$true] %s1292
          %1295 = dma.vmem_to_hbm [thread:$0]  %s1293, 32, %s1290, %s1264
        $region94: #{tpu_custom_call.1} parent=81 // pred_fallthru
          _
      $region82: #{tpu_custom_call.1} parent=5 // pred_fallthru
        _
      %p1296 = scmp.le.s32.totalorder 2, %s21
      // Predicated region
      $region95: #{tpu_custom_call.1} parent=5 // pred_check
        %p1297 = pneg %p1296
      $region96: #{tpu_custom_call.1} parent=5 // pred_check_branch
        %1299 = sbr.rel (%p1297) target = $region98
      $region97: #{tpu_custom_call.1} parent=5 // pred_region
        %s1300 = ssub.s32 %s21, 2
        // Predicated region
        $region99: #{tpu_custom_call.1} parent=97 // pred_check
          %p1301 = pneg %p207
        $region100: #{tpu_custom_call.1} parent=97 // pred_check_branch
          %1303 = sbr.rel (%p1301) target = $region102
        $region101: #{tpu_custom_call.1} parent=97 // pred_region
          %s1304 = sand.u32 %s192, 1
          %s1305 = scalar_lea.sflag [#allocation4], %s1304
          %s1306 = sand.u32 %s192, 1
          %s1307 = smul.addr %s1306, 8
          %s1308 = scalar_lea.vmem [#allocation3], %s1307
          %1309 = dma.done %s1305, 128
        $region102: #{tpu_custom_call.1} parent=97 // pred_fallthru
          _
        // Predicated region
        $region103: #{tpu_custom_call.1} parent=97 // pred_check
          %p1310 = pneg %p233
        $region104: #{tpu_custom_call.1} parent=97 // pred_check_branch
          %1312 = sbr.rel (%p1310) target = $region106
        $region105: #{tpu_custom_call.1} parent=97 // pred_region
          %s1313 = sand.u32 %s218, 1
          %s1314 = scalar_lea.sflag [#allocation6], %s1313
          %s1315 = sand.u32 %s218, 1
          %s1316 = smul.addr %s1315, 2
          %s1317 = scalar_lea.vmem [#allocation5], %s1316
          %1318 = dma.done %s1314, 32
        $region106: #{tpu_custom_call.1} parent=97 // pred_fallthru
          _
      $region98: #{tpu_custom_call.1} parent=5 // pred_fallthru
        _
    $region6: #{tpu_custom_call.1} parent=1 // loop_footer
      %s25 = sadd.s32 1, %s21
    $region7: #{tpu_custom_call.1} parent=1 // loop_footer_branch
      %20 = sbr.rel target = $region3
    $region8: #{tpu_custom_call.1} parent=1 // loop_exit
      _
    %1319 = vsyncpa [#allocation4], 1
    %s1320 = scalar_lea.sflag [#allocation4], 1
    %1321 = vsyncpa %s1320, 1
    %1322 = vsyncpa [#allocation6], 1
    %s1323 = scalar_lea.sflag [#allocation6], 1
    %1324 = vsyncpa %s1323, 1

</llo_original>
